<compile_context>
chip_gen: v7x
topology: tpu7x:2x2x1
jax: 0.10.0
libtpu: 0.0.40
codegen_flags: <defaults>
</compile_context>

<pallas_src>
import functools
import math

import jax
import jax.numpy as jnp
from jax import lax
from jax.experimental import pallas as pl
from jax.experimental.pallas import tpu as pltpu


# ----------------------------------------------------------------------------
# Tile-size helpers (prefer MXU/VPU friendly tiles, fall back to full dim)
# ----------------------------------------------------------------------------
def _pick_tile(n, prefs):
    for t in prefs:
        if t <= n and n % t == 0:
            return t
    return n  # full dim is always a legal block size


_ROW_PREFS = (512, 256, 128, 64, 32, 16, 8)
_K_PREFS = (512, 256, 128, 64, 32, 16, 8)
_LANE_PREFS = (512, 384, 256, 128)


# ----------------------------------------------------------------------------
# Kernel 1: tiled matmul + bias (QKV projection)
# ----------------------------------------------------------------------------
def _matmul_bias_kernel(x_ref, w_ref, b_ref, o_ref, acc_ref, *, relu):
    k = pl.program_id(2)

    @pl.when(k == 0)
    def _():
        acc_ref[...] = jnp.zeros_like(acc_ref)

    acc_ref[...] += jnp.dot(x_ref[...], w_ref[...],
                            preferred_element_type=jnp.float32)

    @pl.when(k == pl.num_programs(2) - 1)
    def _():
        out = acc_ref[...] + b_ref[...].astype(jnp.float32)
        if relu:
            out = jnp.maximum(out, 0.0)
        o_ref[...] = out.astype(o_ref.dtype)


def matmul_bias(x, w, b, relu=False):
    """out = relu?(x @ w + b); x:(M,K) w:(K,N) b:(1,N)."""
    M, K = x.shape
    N = w.shape[1]
    tm = _pick_tile(M, _ROW_PREFS)
    tk = _pick_tile(K, _K_PREFS)
    tn = _pick_tile(N, _LANE_PREFS)
    grid = (M // tm, N // tn, K // tk)
    return pl.pallas_call(
        functools.partial(_matmul_bias_kernel, relu=relu),
        out_shape=jax.ShapeDtypeStruct((M, N), x.dtype),
        grid=grid,
        in_specs=[
            pl.BlockSpec((tm, tk), lambda i, j, kk: (i, kk)),
            pl.BlockSpec((tk, tn), lambda i, j, kk: (kk, j)),
            pl.BlockSpec((1, tn), lambda i, j, kk: (0, j)),
        ],
        out_specs=pl.BlockSpec((tm, tn), lambda i, j, kk: (i, j)),
        scratch_shapes=[pltpu.VMEM((tm, tn), jnp.float32)],
        compiler_params=pltpu.CompilerParams(
            dimension_semantics=("parallel", "parallel", "arbitrary")),
    )(x, w, b)


# ----------------------------------------------------------------------------
# Kernel 2: flash-style attention core (online softmax, no S x S tensor)
#           q,k,v: (B*h, S, dh); 1/sqrt(dh) already folded into q.
# ----------------------------------------------------------------------------
def _flash_attn_kernel(q_ref, k_ref, v_ref, o_ref, m_sc, l_sc, acc_sc):
    ki = pl.program_id(2)

    @pl.when(ki == 0)
    def _():
        m_sc[...] = jnp.full_like(m_sc, -jnp.inf)
        l_sc[...] = jnp.zeros_like(l_sc)
        acc_sc[...] = jnp.zeros_like(acc_sc)

    q = q_ref[...].astype(jnp.float32)           # (1, tq, dh)
    k = k_ref[...].astype(jnp.float32)           # (1, tk, dh)
    v = v_ref[...].astype(jnp.float32)

    s = jnp.einsum("bqd,bkd->bqk", q, k, preferred_element_type=jnp.float32)
    m_prev = m_sc[...]
    m_new = jnp.maximum(m_prev, jnp.max(s, axis=-1, keepdims=True))
    alpha = jnp.exp(m_prev - m_new)
    p = jnp.exp(s - m_new)
    l_sc[...] = alpha * l_sc[...] + jnp.sum(p, axis=-1, keepdims=True)
    acc_sc[...] = alpha * acc_sc[...] + jnp.einsum(
        "bqk,bkd->bqd", p, v, preferred_element_type=jnp.float32)
    m_sc[...] = m_new

    @pl.when(ki == pl.num_programs(2) - 1)
    def _():
        o_ref[...] = (acc_sc[...] *
                      pl.reciprocal(l_sc[...], approx=True)).astype(o_ref.dtype)


def flash_attention(q, k, v):
    BH, S, dh = q.shape
    tq = _pick_tile(S, (256, 128, 64, 32, 16, 8))
    tkv = _pick_tile(S, (512, 256, 128, 64, 32, 16, 8))
    grid = (BH, S // tq, S // tkv)
    return pl.pallas_call(
        _flash_attn_kernel,
        out_shape=jax.ShapeDtypeStruct((BH, S, dh), q.dtype),
        grid=grid,
        in_specs=[
            pl.BlockSpec((1, tq, dh), lambda b, qi, ki: (b, qi, 0)),
            pl.BlockSpec((1, tkv, dh), lambda b, qi, ki: (b, ki, 0)),
            pl.BlockSpec((1, tkv, dh), lambda b, qi, ki: (b, ki, 0)),
        ],
        out_specs=pl.BlockSpec((1, tq, dh), lambda b, qi, ki: (b, qi, 0)),
        scratch_shapes=[
            pltpu.VMEM((1, tq, 1), jnp.float32),    # running max
            pltpu.VMEM((1, tq, 1), jnp.float32),    # running denom
            pltpu.VMEM((1, tq, dh), jnp.float32),   # running numerator
        ],
        compiler_params=pltpu.CompilerParams(
            dimension_semantics=("parallel", "parallel", "arbitrary")),
    )(q, k, v)


# ----------------------------------------------------------------------------
# Kernel 3: SE channel-attention gate.
#           gate = sigmoid(relu(mean_S(src) @ W1) @ W2)  -> (B, D)
# ----------------------------------------------------------------------------
def _se_gate_kernel(src_ref, w1_ref, w2_ref, gate_ref, pool_ref, *, inv_s):
    i = pl.program_id(0)

    @pl.when(i == 0)
    def _():
        pool_ref[...] = jnp.zeros_like(pool_ref)

    pool_ref[...] += jnp.sum(src_ref[...].astype(jnp.float32), axis=0)

    @pl.when(i == pl.num_programs(0) - 1)
    def _():
        pooled = pool_ref[...] * inv_s                               # (B, D)
        hid = jnp.maximum(
            jnp.dot(pooled, w1_ref[...], preferred_element_type=jnp.float32), 0.0)
        y = jnp.dot(hid, w2_ref[...], preferred_element_type=jnp.float32)
        gate_ref[...] = (1.0 / (1.0 + jnp.exp(-y))).astype(gate_ref.dtype)


def se_gate(src, w1_t, w2_t):
    S, B, D = src.shape
    Dr = w1_t.shape[1]
    ts = _pick_tile(S, (512, 256, 128, 64, 32, 16, 8))
    return pl.pallas_call(
        functools.partial(_se_gate_kernel, inv_s=1.0 / S),
        out_shape=jax.ShapeDtypeStruct((B, D), src.dtype),
        grid=(S // ts,),
        in_specs=[
            pl.BlockSpec((ts, B, D), lambda i: (i, 0, 0)),
            pl.BlockSpec((D, Dr), lambda i: (0, 0)),
            pl.BlockSpec((Dr, D), lambda i: (0, 0)),
        ],
        out_specs=pl.BlockSpec((B, D), lambda i: (0, 0)),
        scratch_shapes=[pltpu.VMEM((B, D), jnp.float32)],
        compiler_params=pltpu.CompilerParams(
            dimension_semantics=("arbitrary",)),
    )(src, w1_t, w2_t)


# ----------------------------------------------------------------------------
# Kernel 4: fused out-projection + channel term + residual + LayerNorm (norm1)
#           out = LN(res + a @ Wo + bo + res * gate)
# ----------------------------------------------------------------------------
def _outproj_add_norm_kernel(a_ref, w_ref, b_ref, res_ref, gate_ref,
                             g_ref, be_ref, o_ref, acc_ref, *, eps):
    k = pl.program_id(1)

    @pl.when(k == 0)
    def _():
        acc_ref[...] = jnp.zeros_like(acc_ref)

    acc_ref[...] += jnp.dot(a_ref[...], w_ref[...],
                            preferred_element_type=jnp.float32)

    @pl.when(k == pl.num_programs(1) - 1)
    def _():
        res = res_ref[...].astype(jnp.float32)
        attn = acc_ref[...] + b_ref[...].astype(jnp.float32)
        z = res + attn + res * gate_ref[...].astype(jnp.float32)
        mu = jnp.mean(z, axis=-1, keepdims=True)
        c = z - mu
        var = jnp.mean(c * c, axis=-1, keepdims=True)
        out = c * lax.rsqrt(var + eps) * g_ref[...].astype(jnp.float32) \
            + be_ref[...].astype(jnp.float32)
        o_ref[...] = out.astype(o_ref.dtype)


def outproj_add_norm(a, w, b, res, gate_rows, gamma, beta, eps):
    M, K = a.shape
    D = w.shape[1]
    tm = _pick_tile(M, _ROW_PREFS)
    tk = _pick_tile(K, _K_PREFS)
    grid = (M // tm, K // tk)
    return pl.pallas_call(
        functools.partial(_outproj_add_norm_kernel, eps=eps),
        out_shape=jax.ShapeDtypeStruct((M, D), a.dtype),
        grid=grid,
        in_specs=[
            pl.BlockSpec((tm, tk), lambda i, kk: (i, kk)),   # attention heads merged
            pl.BlockSpec((tk, D), lambda i, kk: (kk, 0)),    # W_out (pre-transposed)
            pl.BlockSpec((1, D), lambda i, kk: (0, 0)),      # b_out
            pl.BlockSpec((tm, D), lambda i, kk: (i, 0)),     # residual src
            pl.BlockSpec((tm, D), lambda i, kk: (i, 0)),     # SE gate per row
            pl.BlockSpec((1, D), lambda i, kk: (0, 0)),      # norm1 gamma
            pl.BlockSpec((1, D), lambda i, kk: (0, 0)),      # norm1 beta
        ],
        out_specs=pl.BlockSpec((tm, D), lambda i, kk: (i, 0)),
        scratch_shapes=[pltpu.VMEM((tm, D), jnp.float32)],
        compiler_params=pltpu.CompilerParams(
            dimension_semantics=("parallel", "arbitrary")),
    )(a, w, b, res, gate_rows, gamma, beta)


# ----------------------------------------------------------------------------
# Kernel 5: fused FFN (linear1 + ReLU + linear2) + residual + LayerNorm (norm2)
#           out = LN(x + relu(x @ W1 + b1) @ W2 + b2); DFF tiled as reduction.
# ----------------------------------------------------------------------------
def _ffn_add_norm_kernel(x_ref, w1_ref, b1_ref, w2_ref, b2_ref,
                         g_ref, be_ref, o_ref, acc_ref, *, eps):
    f = pl.program_id(1)

    @pl.when(f == 0)
    def _():
        acc_ref[...] = jnp.zeros_like(acc_ref)

    x = x_ref[...].astype(jnp.float32)
    h = jnp.dot(x, w1_ref[...], preferred_element_type=jnp.float32) \
        + b1_ref[...].astype(jnp.float32)
    h = jnp.maximum(h, 0.0)
    acc_ref[...] += jnp.dot(h, w2_ref[...], preferred_element_type=jnp.float32)

    @pl.when(f == pl.num_programs(1) - 1)
    def _():
        z = x + acc_ref[...] + b2_ref[...].astype(jnp.float32)
        mu = jnp.mean(z, axis=-1, keepdims=True)
        c = z - mu
        var = jnp.mean(c * c, axis=-1, keepdims=True)
        out = c * lax.rsqrt(var + eps) * g_ref[...].astype(jnp.float32) \
            + be_ref[...].astype(jnp.float32)
        o_ref[...] = out.astype(o_ref.dtype)


def ffn_add_norm(x, w1, b1, w2, b2, gamma, beta, eps):
    M, D = x.shape
    DFF = w1.shape[1]
    tm = _pick_tile(M, (256, 128, 64, 32, 16, 8))
    tf = _pick_tile(DFF, (512, 256, 128))
    grid = (M // tm, DFF // tf)
    return pl.pallas_call(
        functools.partial(_ffn_add_norm_kernel, eps=eps),
        out_shape=jax.ShapeDtypeStruct((M, D), x.dtype),
        grid=grid,
        in_specs=[
            pl.BlockSpec((tm, D), lambda i, f: (i, 0)),      # x (also the residual)
            pl.BlockSpec((D, tf), lambda i, f: (0, f)),      # W1 (pre-transposed)
            pl.BlockSpec((1, tf), lambda i, f: (0, f)),      # b1
            pl.BlockSpec((tf, D), lambda i, f: (f, 0)),      # W2 (pre-transposed)
            pl.BlockSpec((1, D), lambda i, f: (0, 0)),       # b2
            pl.BlockSpec((1, D), lambda i, f: (0, 0)),       # norm2 gamma
            pl.BlockSpec((1, D), lambda i, f: (0, 0)),       # norm2 beta
        ],
        out_specs=pl.BlockSpec((tm, D), lambda i, f: (i, 0)),
        scratch_shapes=[pltpu.VMEM((tm, D), jnp.float32)],
        compiler_params=pltpu.CompilerParams(
            dimension_semantics=("parallel", "arbitrary")),
    )(x, w1, b1, w2, b2, gamma, beta)


# ----------------------------------------------------------------------------
# Parameters (torch layout) and a one-time prep (transpose / scale-fold)
# ----------------------------------------------------------------------------
def init_params(key, d_model, nhead, dim_feedforward, se_reduction):
    d_r = max(1, d_model // se_reduction)
    ks = jax.random.split(key, 10)
    return dict(
        in_proj_w=0.05 * jax.random.normal(ks[0], (3 * d_model, d_model), jnp.float32),
        in_proj_b=0.01 * jax.random.normal(ks[1], (3 * d_model,), jnp.float32),
        out_proj_w=0.05 * jax.random.normal(ks[2], (d_model, d_model), jnp.float32),
        out_proj_b=0.01 * jax.random.normal(ks[3], (d_model,), jnp.float32),
        w_se1=0.1 * jax.random.normal(ks[4], (d_r, d_model), jnp.float32),
        w_se2=0.1 * jax.random.normal(ks[5], (d_model, d_r), jnp.float32),
        w1=0.05 * jax.random.normal(ks[6], (dim_feedforward, d_model), jnp.float32),
        b1=0.01 * jax.random.normal(ks[7], (dim_feedforward,), jnp.float32),
        w2=0.05 * jax.random.normal(ks[8], (d_model, dim_feedforward), jnp.float32),
        b2=0.01 * jax.random.normal(ks[9], (d_model,), jnp.float32),
        norm1_g=jnp.ones((d_model,), jnp.float32),
        norm1_b=jnp.zeros((d_model,), jnp.float32),
        norm2_g=jnp.ones((d_model,), jnp.float32),
        norm2_b=jnp.zeros((d_model,), jnp.float32),
    )


def prep_params(params, d_model, nhead):
    """One-time host prep: pre-transpose all weights (K-major) and fold the
    1/sqrt(dh) attention scale into the Q slice of the QKV projection."""
    dh = d_model // nhead
    scale = 1.0 / math.sqrt(dh)
    w_qkv = params["in_proj_w"].T                       # (D, 3D)
    b_qkv = params["in_proj_b"]
    w_qkv = w_qkv.at[:, :d_model].multiply(scale)
    b_qkv = b_qkv.at[:d_model].multiply(scale)
    return dict(
        w_qkv=w_qkv, b_qkv=b_qkv[None, :],
        w_out_t=params["out_proj_w"].T, b_out=params["out_proj_b"][None, :],
        w_se1_t=params["w_se1"].T, w_se2_t=params["w_se2"].T,
        w1_t=params["w1"].T, b1=params["b1"][None, :],
        w2_t=params["w2"].T, b2=params["b2"][None, :],
        norm1_g=params["norm1_g"][None, :], norm1_b=params["norm1_b"][None, :],
        norm2_g=params["norm2_g"][None, :], norm2_b=params["norm2_b"][None, :],
    )


# ----------------------------------------------------------------------------
# Forward pass
# ----------------------------------------------------------------------------
def encoder_layer_forward(src, prep, nhead, eps=1e-5):
    S, B, D = src.shape
    h = nhead
    dh = D // h
    M = S * B
    x = src.reshape(M, D)

    # SE channel-attention gate (B, D); no padding mask (None path).
    gate = se_gate(src, prep["w_se1_t"], prep["w_se2_t"])
    gate_rows = jnp.broadcast_to(gate[None], (S, B, D)).reshape(M, D)

    # QKV projection (scale pre-folded into W_q / b_q).
    qkv = matmul_bias(x, prep["w_qkv"], prep["b_qkv"])          # (M, 3D)
    q, k, v = jnp.split(qkv, 3, axis=-1)

    def to_heads(t):
        # (S*B, D) -> (S, B, h, dh) -> (B*h, S, dh)  [matches torch view/transpose]
        return t.reshape(S, B, h, dh).transpose(1, 2, 0, 3).reshape(B * h, S, dh)

    # TODO(synk): head split/merge stays as XLA transposes; folding it into the
    # attention BlockSpec index_map needs sub-128 lane slicing (dh < 128).
    attn = flash_attention(to_heads(q), to_heads(k), to_heads(v))  # (B*h, S, dh)
    a = attn.reshape(B, h, S, dh).transpose(2, 0, 1, 3).reshape(M, D)

    # Fused: out-proj + channel term + residual + norm1.
    x1 = outproj_add_norm(a, prep["w_out_t"], prep["b_out"], x, gate_rows,
                          prep["norm1_g"], prep["norm1_b"], eps)

    # Fused FFN (linear1 + ReLU + linear2) + residual + norm2.
    x2 = ffn_add_norm(x1, prep["w1_t"], prep["b1"], prep["w2_t"], prep["b2"],
                      prep["norm2_g"], prep["norm2_b"], eps)
    return x2.reshape(S, B, D)


# ----------------------------------------------------------------------------
# Pure-JAX reference (torch semantics, raw params) for correctness check
# ----------------------------------------------------------------------------
def encoder_layer_reference(src, params, nhead, eps=1e-5):
    S, B, D = src.shape
    h = nhead
    dh = D // h
    x = src.reshape(S * B, D)

    def ln(z, g, b):
        mu = jnp.mean(z, -1, keepdims=True)
        var = jnp.mean((z - mu) ** 2, -1, keepdims=True)
        return (z - mu) / jnp.sqrt(var + eps) * g + b

    # nn.MultiheadAttention (no masks, eval)
    qkv = x @ params["in_proj_w"].T + params["in_proj_b"]
    q, k, v = jnp.split(qkv, 3, axis=-1)
    rh = lambda t: t.reshape(S, B, h, dh).transpose(1, 2, 0, 3).reshape(B * h, S, dh)
    qh, kh, vh = rh(q), rh(k), rh(v)
    s = jnp.einsum("bqd,bkd->bqk", qh / math.sqrt(dh), kh)
    p = jax.nn.softmax(s, axis=-1)
    ah = jnp.einsum("bqk,bkd->bqd", p, vh)
    a = ah.reshape(B, h, S, dh).transpose(2, 0, 1, 3).reshape(S * B, D)
    attn = a @ params["out_proj_w"].T + params["out_proj_b"]

    # SEAttention channel gate (standard squeeze-excite over d_model)
    pooled = jnp.mean(src, axis=0)                              # (B, D)
    hid = jnp.maximum(pooled @ params["w_se1"].T, 0.0)
    gate = jax.nn.sigmoid(hid @ params["w_se2"].T)              # (B, D)
    channel = (src * gate[None]).reshape(S * B, D)

    x = ln(x + attn + channel, params["norm1_g"], params["norm1_b"])
    ff = jnp.maximum(x @ params["w1"].T + params["b1"], 0.0) @ params["w2"].T + params["b2"]
    x = ln(x + ff, params["norm2_g"], params["norm2_b"])
    return x.reshape(S, B, D)


if __name__ == "__main__":
    S, B, D = 8, 2, 32          # seq=8, batch=2, d_model=32
    NHEAD = 4
    DFF = 64                    # dim_feedforward (small for the demo)
    SE_REDUCTION = 4

    key = jax.random.PRNGKey(0)
    key, ksrc = jax.random.split(key)
    src = jax.random.normal(ksrc, (S, B, D), jnp.float32)
    params = init_params(key, D, NHEAD, DFF, SE_REDUCTION)
    prep = prep_params(params, D, NHEAD)

    fwd = jax.jit(functools.partial(encoder_layer_forward, nhead=NHEAD))
    out = jax.block_until_ready(fwd(src, prep))

    ref = jax.block_until_ready(encoder_layer_reference(src, params, NHEAD))
    assert out.shape == (S, B, D)
    err = float(jnp.max(jnp.abs(out - ref)))
    assert err < 5e-3, err

    print("KERNEL_OK")
</pallas_src>

<mosaic_0001>
module attributes {stable_mosaic.version = 11 : i64} {
  func.func @_matmul_bias_kernel(%arg0: i32, %arg1: i32, %arg2: i32, %arg3: memref<16x32xf32, #tpu.memory_space<vmem>>, %arg4: memref<32x96xf32, #tpu.memory_space<vmem>>, %arg5: memref<1x96xf32, #tpu.memory_space<vmem>>, %arg6: memref<16x96xf32, #tpu.memory_space<vmem>>, %arg7: memref<16x96xf32, #tpu.memory_space<vmem>>) attributes {dimension_semantics = [#tpu.dimension_semantics<parallel>, #tpu.dimension_semantics<parallel>, #tpu.dimension_semantics<arbitrary>], iteration_bounds = array<i64: 1, 1, 1>, scalar_prefetch = 0 : i64, scratch_operands = 1 : i64, tpu.core_type = #tpu.core_type<tc>, window_params = [{transform_indices = @transform_0, window_bounds = array<i64: 16, 32>}, {transform_indices = @transform_1, window_bounds = array<i64: 32, 96>}, {transform_indices = @transform_2, window_bounds = array<i64: 1, 96>}, {transform_indices = @transform_3, window_bounds = array<i64: 16, 96>}]} {
    %c0_i32 = arith.constant 0 : i32
    %0 = arith.cmpi eq, %arg2, %c0_i32 : i32
    %1 = arith.extui %0 : i1 to i32
    %c0_i32_0 = arith.constant 0 : i32
    %2 = arith.cmpi ne, %1, %c0_i32_0 : i32
    scf.if %2 {
      %cst_10 = arith.constant 0.000000e+00 : f32
      %12 = vector.broadcast %cst_10 : f32 to vector<16x96xf32>
      %c0_11 = arith.constant 0 : index
      %c0_12 = arith.constant 0 : index
      %13 = vector.load %arg7[%c0_11, %c0_12] : memref<16x96xf32, #tpu.memory_space<vmem>>, vector<16x96xf32>
      tpu.vector_store %arg7[%c0_11, %c0_12], %12 {strides = array<i32>} : memref<16x96xf32, #tpu.memory_space<vmem>>, vector<16x96xf32>,
    } else {
    }
    %c0 = arith.constant 0 : index
    %c0_1 = arith.constant 0 : index
    %3 = vector.load %arg7[%c0, %c0_1] : memref<16x96xf32, #tpu.memory_space<vmem>>, vector<16x96xf32>
    %c0_2 = arith.constant 0 : index
    %c0_3 = arith.constant 0 : index
    %4 = vector.load %arg3[%c0_2, %c0_3] : memref<16x32xf32, #tpu.memory_space<vmem>>, vector<16x32xf32>
    %c0_4 = arith.constant 0 : index
    %c0_5 = arith.constant 0 : index
    %5 = vector.load %arg4[%c0_4, %c0_5] : memref<32x96xf32, #tpu.memory_space<vmem>>, vector<32x96xf32>
    %cst = arith.constant dense<0.000000e+00> : vector<16x96xf32>
    %6 = tpu.matmul %4, %5, %cst {dimension_numbers = #tpu.dot_dimension_numbers<[1], [0], [0], [1], [0, 0, 1, 1], [], []>} : vector<16x32xf32>, vector<32x96xf32>, vector<16x96xf32> -> vector<16x96xf32>
    %7 = arith.addf %3, %6 : vector<16x96xf32>
    %c0_6 = arith.constant 0 : index
    %c0_7 = arith.constant 0 : index
    %8 = vector.load %arg7[%c0_6, %c0_7] : memref<16x96xf32, #tpu.memory_space<vmem>>, vector<16x96xf32>
    tpu.vector_store %arg7[%c0_6, %c0_7], %7 {strides = array<i32>} : memref<16x96xf32, #tpu.memory_space<vmem>>, vector<16x96xf32>,
    %c0_i32_8 = arith.constant 0 : i32
    %9 = arith.cmpi eq, %arg2, %c0_i32_8 : i32
    %10 = arith.extui %9 : i1 to i32
    %c0_i32_9 = arith.constant 0 : i32
    %11 = arith.cmpi ne, %10, %c0_i32_9 : i32
    scf.if %11 {
      %c0_10 = arith.constant 0 : index
      %c0_11 = arith.constant 0 : index
      %12 = vector.load %arg7[%c0_10, %c0_11] : memref<16x96xf32, #tpu.memory_space<vmem>>, vector<16x96xf32>
      %c0_12 = arith.constant 0 : index
      %c0_13 = arith.constant 0 : index
      %13 = vector.load %arg5[%c0_12, %c0_13] : memref<1x96xf32, #tpu.memory_space<vmem>>, vector<1x96xf32>
      %14 = vector.broadcast %13 : vector<1x96xf32> to vector<16x96xf32>
      %15 = arith.addf %12, %14 : vector<16x96xf32>
      %c0_14 = arith.constant 0 : index
      %c0_15 = arith.constant 0 : index
      %16 = vector.load %arg6[%c0_14, %c0_15] : memref<16x96xf32, #tpu.memory_space<vmem>>, vector<16x96xf32>
      tpu.vector_store %arg6[%c0_14, %c0_15], %15 {strides = array<i32>} : memref<16x96xf32, #tpu.memory_space<vmem>>, vector<16x96xf32>,
    } else {
    }
    return
  }
  func.func @transform_0(%arg0: i32, %arg1: i32, %arg2: i32) -> (i32, i32) {
    %c0_i32 = arith.constant 0 : i32
    return %arg0, %arg2 : i32, i32
  }
  func.func @transform_1(%arg0: i32, %arg1: i32, %arg2: i32) -> (i32, i32) {
    %c0_i32 = arith.constant 0 : i32
    return %arg2, %arg1 : i32, i32
  }
  func.func @transform_2(%arg0: i32, %arg1: i32, %arg2: i32) -> (i32, i32) {
    %c0_i32 = arith.constant 0 : i32
    %c0_i32_0 = arith.constant 0 : i32
    return %c0_i32, %arg1 : i32, i32
  }
  func.func @transform_3(%arg0: i32, %arg1: i32, %arg2: i32) -> (i32, i32) {
    %c0_i32 = arith.constant 0 : i32
    return %arg0, %arg1 : i32, i32
  }
}

module attributes {stable_mosaic.version = 11 : i64} {
  func.func @_se_gate_kernel(%arg0: i32, %arg1: memref<8x2x32xf32, #tpu.memory_space<vmem>>, %arg2: memref<32x8xf32, #tpu.memory_space<vmem>>, %arg3: memref<8x32xf32, #tpu.memory_space<vmem>>, %arg4: memref<2x32xf32, #tpu.memory_space<vmem>>, %arg5: memref<2x32xf32, #tpu.memory_space<vmem>>) attributes {dimension_semantics = [#tpu.dimension_semantics<arbitrary>], iteration_bounds = array<i64: 1>, scalar_prefetch = 0 : i64, scratch_operands = 1 : i64, tpu.core_type = #tpu.core_type<tc>, window_params = [{transform_indices = @transform_0, window_bounds = array<i64: 8, 2, 32>}, {pipeline_mode = #tpu.pipeline_mode<synchronous>, transform_indices = @transform_1, window_bounds = array<i64: 32, 8>}, {pipeline_mode = #tpu.pipeline_mode<synchronous>, transform_indices = @transform_2, window_bounds = array<i64: 8, 32>}, {pipeline_mode = #tpu.pipeline_mode<synchronous>, transform_indices = @transform_3, window_bounds = array<i64: 2, 32>}]} {
    %c0_i32 = arith.constant 0 : i32
    %0 = arith.cmpi eq, %arg0, %c0_i32 : i32
    %1 = arith.extui %0 : i1 to i32
    %c0_i32_0 = arith.constant 0 : i32
    %2 = arith.cmpi ne, %1, %c0_i32_0 : i32
    scf.if %2 {
      %cst_9 = arith.constant 0.000000e+00 : f32
      %11 = vector.broadcast %cst_9 : f32 to vector<2x32xf32>
      %c0_10 = arith.constant 0 : index
      %c0_11 = arith.constant 0 : index
      %12 = vector.load %arg5[%c0_10, %c0_11] : memref<2x32xf32, #tpu.memory_space<vmem>>, vector<2x32xf32>
      tpu.vector_store %arg5[%c0_10, %c0_11], %11 {strides = array<i32>} : memref<2x32xf32, #tpu.memory_space<vmem>>, vector<2x32xf32>,
    } else {
    }
    %c0 = arith.constant 0 : index
    %c0_1 = arith.constant 0 : index
    %3 = vector.load %arg5[%c0, %c0_1] : memref<2x32xf32, #tpu.memory_space<vmem>>, vector<2x32xf32>
    %c0_2 = arith.constant 0 : index
    %c0_3 = arith.constant 0 : index
    %c0_4 = arith.constant 0 : index
    %4 = vector.load %arg1[%c0_2, %c0_3, %c0_4] : memref<8x2x32xf32, #tpu.memory_space<vmem>>, vector<8x2x32xf32>
    %cst = arith.constant dense<0.000000e+00> : vector<2x32xf32>
    %5 = vector.multi_reduction <add>, %4, %cst [0] : vector<8x2x32xf32> to vector<2x32xf32>
    %6 = arith.addf %3, %5 : vector<2x32xf32>
    %c0_5 = arith.constant 0 : index
    %c0_6 = arith.constant 0 : index
    %7 = vector.load %arg5[%c0_5, %c0_6] : memref<2x32xf32, #tpu.memory_space<vmem>>, vector<2x32xf32>
    tpu.vector_store %arg5[%c0_5, %c0_6], %6 {strides = array<i32>} : memref<2x32xf32, #tpu.memory_space<vmem>>, vector<2x32xf32>,
    %c0_i32_7 = arith.constant 0 : i32
    %8 = arith.cmpi eq, %arg0, %c0_i32_7 : i32
    %9 = arith.extui %8 : i1 to i32
    %c0_i32_8 = arith.constant 0 : i32
    %10 = arith.cmpi ne, %9, %c0_i32_8 : i32
    scf.if %10 {
      %c0_9 = arith.constant 0 : index
      %c0_10 = arith.constant 0 : index
      %11 = vector.load %arg5[%c0_9, %c0_10] : memref<2x32xf32, #tpu.memory_space<vmem>>, vector<2x32xf32>
      %cst_11 = arith.constant 1.250000e-01 : f32
      %12 = vector.broadcast %cst_11 : f32 to vector<2x32xf32>
      %13 = arith.mulf %11, %12 : vector<2x32xf32>
      %c0_12 = arith.constant 0 : index
      %c0_13 = arith.constant 0 : index
      %14 = vector.load %arg2[%c0_12, %c0_13] : memref<32x8xf32, #tpu.memory_space<vmem>>, vector<32x8xf32>
      %cst_14 = arith.constant dense<0.000000e+00> : vector<2x8xf32>
      %15 = tpu.matmul %13, %14, %cst_14 {dimension_numbers = #tpu.dot_dimension_numbers<[1], [0], [0], [1], [0, 0, 1, 1], [], []>} : vector<2x32xf32>, vector<32x8xf32>, vector<2x8xf32> -> vector<2x8xf32>
      %cst_15 = arith.constant 0.000000e+00 : f32
      %16 = vector.broadcast %cst_15 : f32 to vector<2x8xf32>
      %17 = arith.maximumf %15, %16 : vector<2x8xf32>
      %c0_16 = arith.constant 0 : index
      %c0_17 = arith.constant 0 : index
      %18 = vector.load %arg3[%c0_16, %c0_17] : memref<8x32xf32, #tpu.memory_space<vmem>>, vector<8x32xf32>
      %cst_18 = arith.constant dense<0.000000e+00> : vector<2x32xf32>
      %19 = tpu.matmul %17, %18, %cst_18 {dimension_numbers = #tpu.dot_dimension_numbers<[1], [0], [0], [1], [0, 0, 1, 1], [], []>} : vector<2x8xf32>, vector<8x32xf32>, vector<2x32xf32> -> vector<2x32xf32>
      %cst_19 = arith.constant 0.000000e+00 : f32
      %20 = vector.broadcast %cst_19 : f32 to vector<2x32xf32>
      %21 = arith.subf %20, %19 : vector<2x32xf32>
      %22 = math.exp %21 : vector<2x32xf32>
      %cst_20 = arith.constant 1.000000e+00 : f32
      %23 = vector.broadcast %cst_20 : f32 to vector<2x32xf32>
      %24 = arith.addf %23, %22 : vector<2x32xf32>
      %cst_21 = arith.constant 1.000000e+00 : f32
      %25 = vector.broadcast %cst_21 : f32 to vector<2x32xf32>
      %26 = arith.divf %25, %24 : vector<2x32xf32>
      %c0_22 = arith.constant 0 : index
      %c0_23 = arith.constant 0 : index
      %27 = vector.load %arg4[%c0_22, %c0_23] : memref<2x32xf32, #tpu.memory_space<vmem>>, vector<2x32xf32>
      tpu.vector_store %arg4[%c0_22, %c0_23], %26 {strides = array<i32>} : memref<2x32xf32, #tpu.memory_space<vmem>>, vector<2x32xf32>,
    } else {
    }
    return
  }
  func.func @transform_0(%arg0: i32) -> (i32, i32, i32) {
    %c0_i32 = arith.constant 0 : i32
    %c0_i32_0 = arith.constant 0 : i32
    %c0_i32_1 = arith.constant 0 : i32
    return %arg0, %c0_i32, %c0_i32_0 : i32, i32, i32
  }
  func.func @transform_1(%arg0: i32) -> (i32, i32) {
    %c0_i32 = arith.constant 0 : i32
    %c0_i32_0 = arith.constant 0 : i32
    %c0_i32_1 = arith.constant 0 : i32
    return %c0_i32, %c0_i32_0 : i32, i32
  }
  func.func @transform_2(%arg0: i32) -> (i32, i32) {
    %c0_i32 = arith.constant 0 : i32
    %c0_i32_0 = arith.constant 0 : i32
    %c0_i32_1 = arith.constant 0 : i32
    return %c0_i32, %c0_i32_0 : i32, i32
  }
  func.func @transform_3(%arg0: i32) -> (i32, i32) {
    %c0_i32 = arith.constant 0 : i32
    %c0_i32_0 = arith.constant 0 : i32
    %c0_i32_1 = arith.constant 0 : i32
    return %c0_i32, %c0_i32_0 : i32, i32
  }
}

module attributes {stable_mosaic.version = 11 : i64} {
  func.func @_flash_attn_kernel(%arg0: i32, %arg1: i32, %arg2: i32, %arg3: memref<1x8x8xf32, #tpu.memory_space<vmem>>, %arg4: memref<1x8x8xf32, #tpu.memory_space<vmem>>, %arg5: memref<1x8x8xf32, #tpu.memory_space<vmem>>, %arg6: memref<1x8x8xf32, #tpu.memory_space<vmem>>, %arg7: memref<1x8x1xf32, #tpu.memory_space<vmem>>, %arg8: memref<1x8x1xf32, #tpu.memory_space<vmem>>, %arg9: memref<1x8x8xf32, #tpu.memory_space<vmem>>) attributes {dimension_semantics = [#tpu.dimension_semantics<parallel>, #tpu.dimension_semantics<parallel>, #tpu.dimension_semantics<arbitrary>], iteration_bounds = array<i64: 8, 1, 1>, scalar_prefetch = 0 : i64, scratch_operands = 3 : i64, tpu.core_type = #tpu.core_type<tc>, window_params = [{transform_indices = @transform_0, window_bounds = array<i64: 1, 8, 8>}, {transform_indices = @transform_1, window_bounds = array<i64: 1, 8, 8>}, {transform_indices = @transform_2, window_bounds = array<i64: 1, 8, 8>}, {transform_indices = @transform_3, window_bounds = array<i64: 1, 8, 8>}]} {
    %c0_i32 = arith.constant 0 : i32
    %0 = arith.cmpi eq, %arg2, %c0_i32 : i32
    %1 = arith.extui %0 : i1 to i32
    %c0_i32_0 = arith.constant 0 : i32
    %2 = arith.cmpi ne, %1, %c0_i32_0 : i32
    scf.if %2 {
      %cst_32 = arith.constant 0xFF800000 : f32
      %32 = vector.broadcast %cst_32 : f32 to vector<1x8x1xf32>
      %c0_33 = arith.constant 0 : index
      %c0_34 = arith.constant 0 : index
      %c0_35 = arith.constant 0 : index
      %33 = vector.load %arg7[%c0_33, %c0_34, %c0_35] : memref<1x8x1xf32, #tpu.memory_space<vmem>>, vector<1x8x1xf32>
      tpu.vector_store %arg7[%c0_33, %c0_34, %c0_35], %32 {strides = array<i32>} : memref<1x8x1xf32, #tpu.memory_space<vmem>>, vector<1x8x1xf32>,
      %cst_36 = arith.constant 0.000000e+00 : f32
      %34 = vector.broadcast %cst_36 : f32 to vector<1x8x1xf32>
      %c0_37 = arith.constant 0 : index
      %c0_38 = arith.constant 0 : index
      %c0_39 = arith.constant 0 : index
      %35 = vector.load %arg8[%c0_37, %c0_38, %c0_39] : memref<1x8x1xf32, #tpu.memory_space<vmem>>, vector<1x8x1xf32>
      tpu.vector_store %arg8[%c0_37, %c0_38, %c0_39], %34 {strides = array<i32>} : memref<1x8x1xf32, #tpu.memory_space<vmem>>, vector<1x8x1xf32>,
      %cst_40 = arith.constant 0.000000e+00 : f32
      %36 = vector.broadcast %cst_40 : f32 to vector<1x8x8xf32>
      %c0_41 = arith.constant 0 : index
      %c0_42 = arith.constant 0 : index
      %c0_43 = arith.constant 0 : index
      %37 = vector.load %arg9[%c0_41, %c0_42, %c0_43] : memref<1x8x8xf32, #tpu.memory_space<vmem>>, vector<1x8x8xf32>
      tpu.vector_store %arg9[%c0_41, %c0_42, %c0_43], %36 {strides = array<i32>} : memref<1x8x8xf32, #tpu.memory_space<vmem>>, vector<1x8x8xf32>,
    } else {
    }
    %c0 = arith.constant 0 : index
    %c0_1 = arith.constant 0 : index
    %c0_2 = arith.constant 0 : index
    %3 = vector.load %arg3[%c0, %c0_1, %c0_2] : memref<1x8x8xf32, #tpu.memory_space<vmem>>, vector<1x8x8xf32>
    %c0_3 = arith.constant 0 : index
    %c0_4 = arith.constant 0 : index
    %c0_5 = arith.constant 0 : index
    %4 = vector.load %arg4[%c0_3, %c0_4, %c0_5] : memref<1x8x8xf32, #tpu.memory_space<vmem>>, vector<1x8x8xf32>
    %c0_6 = arith.constant 0 : index
    %c0_7 = arith.constant 0 : index
    %c0_8 = arith.constant 0 : index
    %5 = vector.load %arg5[%c0_6, %c0_7, %c0_8] : memref<1x8x8xf32, #tpu.memory_space<vmem>>, vector<1x8x8xf32>
    "tpu.trace_start"() <{level = 10 : i32, message = "bqd,bkd->bqk"}> : () -> ()
    %cst = arith.constant dense<0.000000e+00> : vector<1x8x8xf32>
    %6 = tpu.matmul %3, %4, %cst {dimension_numbers = #tpu.dot_dimension_numbers<[2], [2], [1], [1], [0, 0, 0, 1, 1, 1], [0], [0]>} : vector<1x8x8xf32>, vector<1x8x8xf32>, vector<1x8x8xf32> -> vector<1x8x8xf32>
    "tpu.trace_stop"() : () -> ()
    %c0_9 = arith.constant 0 : index
    %c0_10 = arith.constant 0 : index
    %c0_11 = arith.constant 0 : index
    %7 = vector.load %arg7[%c0_9, %c0_10, %c0_11] : memref<1x8x1xf32, #tpu.memory_space<vmem>>, vector<1x8x1xf32>
    %cst_12 = arith.constant dense<0xFF800000> : vector<1x8xf32>
    %8 = vector.multi_reduction <maximumf>, %6, %cst_12 [2] : vector<1x8x8xf32> to vector<1x8xf32>
    %9 = vector.shape_cast %8 : vector<1x8xf32> to vector<1x8x1xf32>
    %10 = arith.maximumf %7, %9 : vector<1x8x1xf32>
    %11 = arith.subf %7, %10 : vector<1x8x1xf32>
    %12 = math.exp %11 : vector<1x8x1xf32>
    %13 = vector.broadcast %10 : vector<1x8x1xf32> to vector<1x8x8xf32>
    %14 = arith.subf %6, %13 : vector<1x8x8xf32>
    %15 = math.exp %14 : vector<1x8x8xf32>
    %c0_13 = arith.constant 0 : index
    %c0_14 = arith.constant 0 : index
    %c0_15 = arith.constant 0 : index
    %16 = vector.load %arg8[%c0_13, %c0_14, %c0_15] : memref<1x8x1xf32, #tpu.memory_space<vmem>>, vector<1x8x1xf32>
    %17 = arith.mulf %12, %16 : vector<1x8x1xf32>
    %cst_16 = arith.constant dense<0.000000e+00> : vector<1x8xf32>
    %18 = vector.multi_reduction <add>, %15, %cst_16 [2] : vector<1x8x8xf32> to vector<1x8xf32>
    %19 = vector.shape_cast %18 : vector<1x8xf32> to vector<1x8x1xf32>
    %20 = arith.addf %17, %19 : vector<1x8x1xf32>
    %c0_17 = arith.constant 0 : index
    %c0_18 = arith.constant 0 : index
    %c0_19 = arith.constant 0 : index
    %21 = vector.load %arg8[%c0_17, %c0_18, %c0_19] : memref<1x8x1xf32, #tpu.memory_space<vmem>>, vector<1x8x1xf32>
    tpu.vector_store %arg8[%c0_17, %c0_18, %c0_19], %20 {strides = array<i32>} : memref<1x8x1xf32, #tpu.memory_space<vmem>>, vector<1x8x1xf32>,
    %c0_20 = arith.constant 0 : index
    %c0_21 = arith.constant 0 : index
    %c0_22 = arith.constant 0 : index
    %22 = vector.load %arg9[%c0_20, %c0_21, %c0_22] : memref<1x8x8xf32, #tpu.memory_space<vmem>>, vector<1x8x8xf32>
    %23 = vector.broadcast %12 : vector<1x8x1xf32> to vector<1x8x8xf32>
    %24 = arith.mulf %23, %22 : vector<1x8x8xf32>
    "tpu.trace_start"() <{level = 10 : i32, message = "bqk,bkd->bqd"}> : () -> ()
    %cst_23 = arith.constant dense<0.000000e+00> : vector<1x8x8xf32>
    %25 = tpu.matmul %15, %5, %cst_23 {dimension_numbers = #tpu.dot_dimension_numbers<[2], [1], [1], [2], [0, 0, 0, 1, 1, 2], [0], [0]>} : vector<1x8x8xf32>, vector<1x8x8xf32>, vector<1x8x8xf32> -> vector<1x8x8xf32>
    "tpu.trace_stop"() : () -> ()
    %26 = arith.addf %24, %25 : vector<1x8x8xf32>
    %c0_24 = arith.constant 0 : index
    %c0_25 = arith.constant 0 : index
    %c0_26 = arith.constant 0 : index
    %27 = vector.load %arg9[%c0_24, %c0_25, %c0_26] : memref<1x8x8xf32, #tpu.memory_space<vmem>>, vector<1x8x8xf32>
    tpu.vector_store %arg9[%c0_24, %c0_25, %c0_26], %26 {strides = array<i32>} : memref<1x8x8xf32, #tpu.memory_space<vmem>>, vector<1x8x8xf32>,
    %c0_27 = arith.constant 0 : index
    %c0_28 = arith.constant 0 : index
    %c0_29 = arith.constant 0 : index
    %28 = vector.load %arg7[%c0_27, %c0_28, %c0_29] : memref<1x8x1xf32, #tpu.memory_space<vmem>>, vector<1x8x1xf32>
    tpu.vector_store %arg7[%c0_27, %c0_28, %c0_29], %10 {strides = array<i32>} : memref<1x8x1xf32, #tpu.memory_space<vmem>>, vector<1x8x1xf32>,
    %c0_i32_30 = arith.constant 0 : i32
    %29 = arith.cmpi eq, %arg2, %c0_i32_30 : i32
    %30 = arith.extui %29 : i1 to i32
    %c0_i32_31 = arith.constant 0 : i32
    %31 = arith.cmpi ne, %30, %c0_i32_31 : i32
    scf.if %31 {
      %c0_32 = arith.constant 0 : index
      %c0_33 = arith.constant 0 : index
      %c0_34 = arith.constant 0 : index
      %32 = vector.load %arg9[%c0_32, %c0_33, %c0_34] : memref<1x8x8xf32, #tpu.memory_space<vmem>>, vector<1x8x8xf32>
      %c0_35 = arith.constant 0 : index
      %c0_36 = arith.constant 0 : index
      %c0_37 = arith.constant 0 : index
      %33 = vector.load %arg8[%c0_35, %c0_36, %c0_37] : memref<1x8x1xf32, #tpu.memory_space<vmem>>, vector<1x8x1xf32>
      %34 = tpu.reciprocal %33 {approx = true} : vector<1x8x1xf32> -> vector<1x8x1xf32>
      %35 = vector.broadcast %34 : vector<1x8x1xf32> to vector<1x8x8xf32>
      %36 = arith.mulf %32, %35 : vector<1x8x8xf32>
      %c0_38 = arith.constant 0 : index
      %c0_39 = arith.constant 0 : index
      %c0_40 = arith.constant 0 : index
      %37 = vector.load %arg6[%c0_38, %c0_39, %c0_40] : memref<1x8x8xf32, #tpu.memory_space<vmem>>, vector<1x8x8xf32>
      tpu.vector_store %arg6[%c0_38, %c0_39, %c0_40], %36 {strides = array<i32>} : memref<1x8x8xf32, #tpu.memory_space<vmem>>, vector<1x8x8xf32>,
    } else {
    }
    return
  }
  func.func @transform_0(%arg0: i32, %arg1: i32, %arg2: i32) -> (i32, i32, i32) {
    %c0_i32 = arith.constant 0 : i32
    %c0_i32_0 = arith.constant 0 : i32
    return %arg0, %arg1, %c0_i32 : i32, i32, i32
  }
  func.func @transform_1(%arg0: i32, %arg1: i32, %arg2: i32) -> (i32, i32, i32) {
    %c0_i32 = arith.constant 0 : i32
    %c0_i32_0 = arith.constant 0 : i32
    return %arg0, %arg2, %c0_i32 : i32, i32, i32
  }
  func.func @transform_2(%arg0: i32, %arg1: i32, %arg2: i32) -> (i32, i32, i32) {
    %c0_i32 = arith.constant 0 : i32
    %c0_i32_0 = arith.constant 0 : i32
    return %arg0, %arg2, %c0_i32 : i32, i32, i32
  }
  func.func @transform_3(%arg0: i32, %arg1: i32, %arg2: i32) -> (i32, i32, i32) {
    %c0_i32 = arith.constant 0 : i32
    %c0_i32_0 = arith.constant 0 : i32
    return %arg0, %arg1, %c0_i32 : i32, i32, i32
  }
}

module attributes {stable_mosaic.version = 11 : i64} {
  func.func @_outproj_add_norm_kernel(%arg0: i32, %arg1: i32, %arg2: memref<16x32xf32, #tpu.memory_space<vmem>>, %arg3: memref<32x32xf32, #tpu.memory_space<vmem>>, %arg4: memref<1x32xf32, #tpu.memory_space<vmem>>, %arg5: memref<16x32xf32, #tpu.memory_space<vmem>>, %arg6: memref<16x32xf32, #tpu.memory_space<vmem>>, %arg7: memref<1x32xf32, #tpu.memory_space<vmem>>, %arg8: memref<1x32xf32, #tpu.memory_space<vmem>>, %arg9: memref<16x32xf32, #tpu.memory_space<vmem>>, %arg10: memref<16x32xf32, #tpu.memory_space<vmem>>) attributes {dimension_semantics = [#tpu.dimension_semantics<parallel>, #tpu.dimension_semantics<arbitrary>], iteration_bounds = array<i64: 1, 1>, scalar_prefetch = 0 : i64, scratch_operands = 1 : i64, tpu.core_type = #tpu.core_type<tc>, window_params = [{transform_indices = @transform_0, window_bounds = array<i64: 16, 32>}, {transform_indices = @transform_1, window_bounds = array<i64: 32, 32>}, {pipeline_mode = #tpu.pipeline_mode<synchronous>, transform_indices = @transform_2, window_bounds = array<i64: 1, 32>}, {transform_indices = @transform_3, window_bounds = array<i64: 16, 32>}, {transform_indices = @transform_4, window_bounds = array<i64: 16, 32>}, {pipeline_mode = #tpu.pipeline_mode<synchronous>, transform_indices = @transform_5, window_bounds = array<i64: 1, 32>}, {pipeline_mode = #tpu.pipeline_mode<synchronous>, transform_indices = @transform_6, window_bounds = array<i64: 1, 32>}, {transform_indices = @transform_7, window_bounds = array<i64: 16, 32>}]} {
    %c0_i32 = arith.constant 0 : i32
    %0 = arith.cmpi eq, %arg1, %c0_i32 : i32
    %1 = arith.extui %0 : i1 to i32
    %c0_i32_0 = arith.constant 0 : i32
    %2 = arith.cmpi ne, %1, %c0_i32_0 : i32
    scf.if %2 {
      %cst_10 = arith.constant 0.000000e+00 : f32
      %12 = vector.broadcast %cst_10 : f32 to vector<16x32xf32>
      %c0_11 = arith.constant 0 : index
      %c0_12 = arith.constant 0 : index
      %13 = vector.load %arg10[%c0_11, %c0_12] : memref<16x32xf32, #tpu.memory_space<vmem>>, vector<16x32xf32>
      tpu.vector_store %arg10[%c0_11, %c0_12], %12 {strides = array<i32>} : memref<16x32xf32, #tpu.memory_space<vmem>>, vector<16x32xf32>,
    } else {
    }
    %c0 = arith.constant 0 : index
    %c0_1 = arith.constant 0 : index
    %3 = vector.load %arg10[%c0, %c0_1] : memref<16x32xf32, #tpu.memory_space<vmem>>, vector<16x32xf32>
    %c0_2 = arith.constant 0 : index
    %c0_3 = arith.constant 0 : index
    %4 = vector.load %arg2[%c0_2, %c0_3] : memref<16x32xf32, #tpu.memory_space<vmem>>, vector<16x32xf32>
    %c0_4 = arith.constant 0 : index
    %c0_5 = arith.constant 0 : index
    %5 = vector.load %arg3[%c0_4, %c0_5] : memref<32x32xf32, #tpu.memory_space<vmem>>, vector<32x32xf32>
    %cst = arith.constant dense<0.000000e+00> : vector<16x32xf32>
    %6 = tpu.matmul %4, %5, %cst {dimension_numbers = #tpu.dot_dimension_numbers<[1], [0], [0], [1], [0, 0, 1, 1], [], []>} : vector<16x32xf32>, vector<32x32xf32>, vector<16x32xf32> -> vector<16x32xf32>
    %7 = arith.addf %3, %6 : vector<16x32xf32>
    %c0_6 = arith.constant 0 : index
    %c0_7 = arith.constant 0 : index
    %8 = vector.load %arg10[%c0_6, %c0_7] : memref<16x32xf32, #tpu.memory_space<vmem>>, vector<16x32xf32>
    tpu.vector_store %arg10[%c0_6, %c0_7], %7 {strides = array<i32>} : memref<16x32xf32, #tpu.memory_space<vmem>>, vector<16x32xf32>,
    %c0_i32_8 = arith.constant 0 : i32
    %9 = arith.cmpi eq, %arg1, %c0_i32_8 : i32
    %10 = arith.extui %9 : i1 to i32
    %c0_i32_9 = arith.constant 0 : i32
    %11 = arith.cmpi ne, %10, %c0_i32_9 : i32
    scf.if %11 {
      %c0_10 = arith.constant 0 : index
      %c0_11 = arith.constant 0 : index
      %12 = vector.load %arg5[%c0_10, %c0_11] : memref<16x32xf32, #tpu.memory_space<vmem>>, vector<16x32xf32>
      %c0_12 = arith.constant 0 : index
      %c0_13 = arith.constant 0 : index
      %13 = vector.load %arg10[%c0_12, %c0_13] : memref<16x32xf32, #tpu.memory_space<vmem>>, vector<16x32xf32>
      %c0_14 = arith.constant 0 : index
      %c0_15 = arith.constant 0 : index
      %14 = vector.load %arg4[%c0_14, %c0_15] : memref<1x32xf32, #tpu.memory_space<vmem>>, vector<1x32xf32>
      %15 = vector.broadcast %14 : vector<1x32xf32> to vector<16x32xf32>
      %16 = arith.addf %13, %15 : vector<16x32xf32>
      %17 = arith.addf %12, %16 : vector<16x32xf32>
      %c0_16 = arith.constant 0 : index
      %c0_17 = arith.constant 0 : index
      %18 = vector.load %arg6[%c0_16, %c0_17] : memref<16x32xf32, #tpu.memory_space<vmem>>, vector<16x32xf32>
      %19 = arith.mulf %12, %18 : vector<16x32xf32>
      %20 = arith.addf %17, %19 : vector<16x32xf32>
      %cst_18 = arith.constant dense<0.000000e+00> : vector<16xf32>
      %21 = vector.multi_reduction <add>, %20, %cst_18 [1] : vector<16x32xf32> to vector<16xf32>
      %22 = vector.shape_cast %21 : vector<16xf32> to vector<16x1xf32>
      %cst_19 = arith.constant 3.200000e+01 : f32
      %23 = vector.broadcast %cst_19 : f32 to vector<16x1xf32>
      %24 = arith.divf %22, %23 : vector<16x1xf32>
      %25 = vector.broadcast %24 : vector<16x1xf32> to vector<16x32xf32>
      %26 = arith.subf %20, %25 : vector<16x32xf32>
      %27 = arith.mulf %26, %26 : vector<16x32xf32>
      %cst_20 = arith.constant dense<0.000000e+00> : vector<16xf32>
      %28 = vector.multi_reduction <add>, %27, %cst_20 [1] : vector<16x32xf32> to vector<16xf32>
      %29 = vector.shape_cast %28 : vector<16xf32> to vector<16x1xf32>
      %cst_21 = arith.constant 3.200000e+01 : f32
      %30 = vector.broadcast %cst_21 : f32 to vector<16x1xf32>
      %31 = arith.divf %29, %30 : vector<16x1xf32>
      %cst_22 = arith.constant 9.99999974E-6 : f32
      %32 = vector.broadcast %cst_22 : f32 to vector<16x1xf32>
      %33 = arith.addf %31, %32 : vector<16x1xf32>
      %34 = math.rsqrt %33 : vector<16x1xf32>
      %35 = vector.broadcast %34 : vector<16x1xf32> to vector<16x32xf32>
      %36 = arith.mulf %26, %35 : vector<16x32xf32>
      %c0_23 = arith.constant 0 : index
      %c0_24 = arith.constant 0 : index
      %37 = vector.load %arg7[%c0_23, %c0_24] : memref<1x32xf32, #tpu.memory_space<vmem>>, vector<1x32xf32>
      %38 = vector.broadcast %37 : vector<1x32xf32> to vector<16x32xf32>
      %39 = arith.mulf %36, %38 : vector<16x32xf32>
      %c0_25 = arith.constant 0 : index
      %c0_26 = arith.constant 0 : index
      %40 = vector.load %arg8[%c0_25, %c0_26] : memref<1x32xf32, #tpu.memory_space<vmem>>, vector<1x32xf32>
      %41 = vector.broadcast %40 : vector<1x32xf32> to vector<16x32xf32>
      %42 = arith.addf %39, %41 : vector<16x32xf32>
      %c0_27 = arith.constant 0 : index
      %c0_28 = arith.constant 0 : index
      %43 = vector.load %arg9[%c0_27, %c0_28] : memref<16x32xf32, #tpu.memory_space<vmem>>, vector<16x32xf32>
      tpu.vector_store %arg9[%c0_27, %c0_28], %42 {strides = array<i32>} : memref<16x32xf32, #tpu.memory_space<vmem>>, vector<16x32xf32>,
    } else {
    }
    return
  }
  func.func @transform_0(%arg0: i32, %arg1: i32) -> (i32, i32) {
    %c0_i32 = arith.constant 0 : i32
    return %arg0, %arg1 : i32, i32
  }
  func.func @transform_1(%arg0: i32, %arg1: i32) -> (i32, i32) {
    %c0_i32 = arith.constant 0 : i32
    %c0_i32_0 = arith.constant 0 : i32
    return %arg1, %c0_i32 : i32, i32
  }
  func.func @transform_2(%arg0: i32, %arg1: i32) -> (i32, i32) {
    %c0_i32 = arith.constant 0 : i32
    %c0_i32_0 = arith.constant 0 : i32
    %c0_i32_1 = arith.constant 0 : i32
    return %c0_i32, %c0_i32_0 : i32, i32
  }
  func.func @transform_3(%arg0: i32, %arg1: i32) -> (i32, i32) {
    %c0_i32 = arith.constant 0 : i32
    %c0_i32_0 = arith.constant 0 : i32
    return %arg0, %c0_i32 : i32, i32
  }
  func.func @transform_4(%arg0: i32, %arg1: i32) -> (i32, i32) {
    %c0_i32 = arith.constant 0 : i32
    %c0_i32_0 = arith.constant 0 : i32
    return %arg0, %c0_i32 : i32, i32
  }
  func.func @transform_5(%arg0: i32, %arg1: i32) -> (i32, i32) {
    %c0_i32 = arith.constant 0 : i32
    %c0_i32_0 = arith.constant 0 : i32
    %c0_i32_1 = arith.constant 0 : i32
    return %c0_i32, %c0_i32_0 : i32, i32
  }
  func.func @transform_6(%arg0: i32, %arg1: i32) -> (i32, i32) {
    %c0_i32 = arith.constant 0 : i32
    %c0_i32_0 = arith.constant 0 : i32
    %c0_i32_1 = arith.constant 0 : i32
    return %c0_i32, %c0_i32_0 : i32, i32
  }
  func.func @transform_7(%arg0: i32, %arg1: i32) -> (i32, i32) {
    %c0_i32 = arith.constant 0 : i32
    %c0_i32_0 = arith.constant 0 : i32
    return %arg0, %c0_i32 : i32, i32
  }
}

module attributes {stable_mosaic.version = 11 : i64} {
  func.func @_ffn_add_norm_kernel(%arg0: i32, %arg1: i32, %arg2: memref<16x32xf32, #tpu.memory_space<vmem>>, %arg3: memref<32x64xf32, #tpu.memory_space<vmem>>, %arg4: memref<1x64xf32, #tpu.memory_space<vmem>>, %arg5: memref<64x32xf32, #tpu.memory_space<vmem>>, %arg6: memref<1x32xf32, #tpu.memory_space<vmem>>, %arg7: memref<1x32xf32, #tpu.memory_space<vmem>>, %arg8: memref<1x32xf32, #tpu.memory_space<vmem>>, %arg9: memref<16x32xf32, #tpu.memory_space<vmem>>, %arg10: memref<16x32xf32, #tpu.memory_space<vmem>>) attributes {dimension_semantics = [#tpu.dimension_semantics<parallel>, #tpu.dimension_semantics<arbitrary>], iteration_bounds = array<i64: 1, 1>, scalar_prefetch = 0 : i64, scratch_operands = 1 : i64, tpu.core_type = #tpu.core_type<tc>, window_params = [{transform_indices = @transform_0, window_bounds = array<i64: 16, 32>}, {transform_indices = @transform_1, window_bounds = array<i64: 32, 64>}, {transform_indices = @transform_2, window_bounds = array<i64: 1, 64>}, {transform_indices = @transform_3, window_bounds = array<i64: 64, 32>}, {pipeline_mode = #tpu.pipeline_mode<synchronous>, transform_indices = @transform_4, window_bounds = array<i64: 1, 32>}, {pipeline_mode = #tpu.pipeline_mode<synchronous>, transform_indices = @transform_5, window_bounds = array<i64: 1, 32>}, {pipeline_mode = #tpu.pipeline_mode<synchronous>, transform_indices = @transform_6, window_bounds = array<i64: 1, 32>}, {transform_indices = @transform_7, window_bounds = array<i64: 16, 32>}]} {
    %c0_i32 = arith.constant 0 : i32
    %0 = arith.cmpi eq, %arg1, %c0_i32 : i32
    %1 = arith.extui %0 : i1 to i32
    %c0_i32_0 = arith.constant 0 : i32
    %2 = arith.cmpi ne, %1, %c0_i32_0 : i32
    scf.if %2 {
      %cst_16 = arith.constant 0.000000e+00 : f32
      %19 = vector.broadcast %cst_16 : f32 to vector<16x32xf32>
      %c0_17 = arith.constant 0 : index
      %c0_18 = arith.constant 0 : index
      %20 = vector.load %arg10[%c0_17, %c0_18] : memref<16x32xf32, #tpu.memory_space<vmem>>, vector<16x32xf32>
      tpu.vector_store %arg10[%c0_17, %c0_18], %19 {strides = array<i32>} : memref<16x32xf32, #tpu.memory_space<vmem>>, vector<16x32xf32>,
    } else {
    }
    %c0 = arith.constant 0 : index
    %c0_1 = arith.constant 0 : index
    %3 = vector.load %arg2[%c0, %c0_1] : memref<16x32xf32, #tpu.memory_space<vmem>>, vector<16x32xf32>
    %c0_2 = arith.constant 0 : index
    %c0_3 = arith.constant 0 : index
    %4 = vector.load %arg3[%c0_2, %c0_3] : memref<32x64xf32, #tpu.memory_space<vmem>>, vector<32x64xf32>
    %cst = arith.constant dense<0.000000e+00> : vector<16x64xf32>
    %5 = tpu.matmul %3, %4, %cst {dimension_numbers = #tpu.dot_dimension_numbers<[1], [0], [0], [1], [0, 0, 1, 1], [], []>} : vector<16x32xf32>, vector<32x64xf32>, vector<16x64xf32> -> vector<16x64xf32>
    %c0_4 = arith.constant 0 : index
    %c0_5 = arith.constant 0 : index
    %6 = vector.load %arg4[%c0_4, %c0_5] : memref<1x64xf32, #tpu.memory_space<vmem>>, vector<1x64xf32>
    %7 = vector.broadcast %6 : vector<1x64xf32> to vector<16x64xf32>
    %8 = arith.addf %5, %7 : vector<16x64xf32>
    %cst_6 = arith.constant 0.000000e+00 : f32
    %9 = vector.broadcast %cst_6 : f32 to vector<16x64xf32>
    %10 = arith.maximumf %8, %9 : vector<16x64xf32>
    %c0_7 = arith.constant 0 : index
    %c0_8 = arith.constant 0 : index
    %11 = vector.load %arg10[%c0_7, %c0_8] : memref<16x32xf32, #tpu.memory_space<vmem>>, vector<16x32xf32>
    %c0_9 = arith.constant 0 : index
    %c0_10 = arith.constant 0 : index
    %12 = vector.load %arg5[%c0_9, %c0_10] : memref<64x32xf32, #tpu.memory_space<vmem>>, vector<64x32xf32>
    %cst_11 = arith.constant dense<0.000000e+00> : vector<16x32xf32>
    %13 = tpu.matmul %10, %12, %cst_11 {dimension_numbers = #tpu.dot_dimension_numbers<[1], [0], [0], [1], [0, 0, 1, 1], [], []>} : vector<16x64xf32>, vector<64x32xf32>, vector<16x32xf32> -> vector<16x32xf32>
    %14 = arith.addf %11, %13 : vector<16x32xf32>
    %c0_12 = arith.constant 0 : index
    %c0_13 = arith.constant 0 : index
    %15 = vector.load %arg10[%c0_12, %c0_13] : memref<16x32xf32, #tpu.memory_space<vmem>>, vector<16x32xf32>
    tpu.vector_store %arg10[%c0_12, %c0_13], %14 {strides = array<i32>} : memref<16x32xf32, #tpu.memory_space<vmem>>, vector<16x32xf32>,
    %c0_i32_14 = arith.constant 0 : i32
    %16 = arith.cmpi eq, %arg1, %c0_i32_14 : i32
    %17 = arith.extui %16 : i1 to i32
    %c0_i32_15 = arith.constant 0 : i32
    %18 = arith.cmpi ne, %17, %c0_i32_15 : i32
    scf.if %18 {
      %c0_16 = arith.constant 0 : index
      %c0_17 = arith.constant 0 : index
      %19 = vector.load %arg10[%c0_16, %c0_17] : memref<16x32xf32, #tpu.memory_space<vmem>>, vector<16x32xf32>
      %20 = arith.addf %3, %19 : vector<16x32xf32>
      %c0_18 = arith.constant 0 : index
      %c0_19 = arith.constant 0 : index
      %21 = vector.load %arg6[%c0_18, %c0_19] : memref<1x32xf32, #tpu.memory_space<vmem>>, vector<1x32xf32>
      %22 = vector.broadcast %21 : vector<1x32xf32> to vector<16x32xf32>
      %23 = arith.addf %20, %22 : vector<16x32xf32>
      %cst_20 = arith.constant dense<0.000000e+00> : vector<16xf32>
      %24 = vector.multi_reduction <add>, %23, %cst_20 [1] : vector<16x32xf32> to vector<16xf32>
      %25 = vector.shape_cast %24 : vector<16xf32> to vector<16x1xf32>
      %cst_21 = arith.constant 3.200000e+01 : f32
      %26 = vector.broadcast %cst_21 : f32 to vector<16x1xf32>
      %27 = arith.divf %25, %26 : vector<16x1xf32>
      %28 = vector.broadcast %27 : vector<16x1xf32> to vector<16x32xf32>
      %29 = arith.subf %23, %28 : vector<16x32xf32>
      %30 = arith.mulf %29, %29 : vector<16x32xf32>
      %cst_22 = arith.constant dense<0.000000e+00> : vector<16xf32>
      %31 = vector.multi_reduction <add>, %30, %cst_22 [1] : vector<16x32xf32> to vector<16xf32>
      %32 = vector.shape_cast %31 : vector<16xf32> to vector<16x1xf32>
      %cst_23 = arith.constant 3.200000e+01 : f32
      %33 = vector.broadcast %cst_23 : f32 to vector<16x1xf32>
      %34 = arith.divf %32, %33 : vector<16x1xf32>
      %cst_24 = arith.constant 9.99999974E-6 : f32
      %35 = vector.broadcast %cst_24 : f32 to vector<16x1xf32>
      %36 = arith.addf %34, %35 : vector<16x1xf32>
      %37 = math.rsqrt %36 : vector<16x1xf32>
      %38 = vector.broadcast %37 : vector<16x1xf32> to vector<16x32xf32>
      %39 = arith.mulf %29, %38 : vector<16x32xf32>
      %c0_25 = arith.constant 0 : index
      %c0_26 = arith.constant 0 : index
      %40 = vector.load %arg7[%c0_25, %c0_26] : memref<1x32xf32, #tpu.memory_space<vmem>>, vector<1x32xf32>
      %41 = vector.broadcast %40 : vector<1x32xf32> to vector<16x32xf32>
      %42 = arith.mulf %39, %41 : vector<16x32xf32>
      %c0_27 = arith.constant 0 : index
      %c0_28 = arith.constant 0 : index
      %43 = vector.load %arg8[%c0_27, %c0_28] : memref<1x32xf32, #tpu.memory_space<vmem>>, vector<1x32xf32>
      %44 = vector.broadcast %43 : vector<1x32xf32> to vector<16x32xf32>
      %45 = arith.addf %42, %44 : vector<16x32xf32>
      %c0_29 = arith.constant 0 : index
      %c0_30 = arith.constant 0 : index
      %46 = vector.load %arg9[%c0_29, %c0_30] : memref<16x32xf32, #tpu.memory_space<vmem>>, vector<16x32xf32>
      tpu.vector_store %arg9[%c0_29, %c0_30], %45 {strides = array<i32>} : memref<16x32xf32, #tpu.memory_space<vmem>>, vector<16x32xf32>,
    } else {
    }
    return
  }
  func.func @transform_0(%arg0: i32, %arg1: i32) -> (i32, i32) {
    %c0_i32 = arith.constant 0 : i32
    %c0_i32_0 = arith.constant 0 : i32
    return %arg0, %c0_i32 : i32, i32
  }
  func.func @transform_1(%arg0: i32, %arg1: i32) -> (i32, i32) {
    %c0_i32 = arith.constant 0 : i32
    %c0_i32_0 = arith.constant 0 : i32
    return %c0_i32, %arg1 : i32, i32
  }
  func.func @transform_2(%arg0: i32, %arg1: i32) -> (i32, i32) {
    %c0_i32 = arith.constant 0 : i32
    %c0_i32_0 = arith.constant 0 : i32
    return %c0_i32, %arg1 : i32, i32
  }
  func.func @transform_3(%arg0: i32, %arg1: i32) -> (i32, i32) {
    %c0_i32 = arith.constant 0 : i32
    %c0_i32_0 = arith.constant 0 : i32
    return %arg1, %c0_i32 : i32, i32
  }
  func.func @transform_4(%arg0: i32, %arg1: i32) -> (i32, i32) {
    %c0_i32 = arith.constant 0 : i32
    %c0_i32_0 = arith.constant 0 : i32
    %c0_i32_1 = arith.constant 0 : i32
    return %c0_i32, %c0_i32_0 : i32, i32
  }
  func.func @transform_5(%arg0: i32, %arg1: i32) -> (i32, i32) {
    %c0_i32 = arith.constant 0 : i32
    %c0_i32_0 = arith.constant 0 : i32
    %c0_i32_1 = arith.constant 0 : i32
    return %c0_i32, %c0_i32_0 : i32, i32
  }
  func.func @transform_6(%arg0: i32, %arg1: i32) -> (i32, i32) {
    %c0_i32 = arith.constant 0 : i32
    %c0_i32_0 = arith.constant 0 : i32
    %c0_i32_1 = arith.constant 0 : i32
    return %c0_i32, %c0_i32_0 : i32, i32
  }
  func.func @transform_7(%arg0: i32, %arg1: i32) -> (i32, i32) {
    %c0_i32 = arith.constant 0 : i32
    %c0_i32_0 = arith.constant 0 : i32
    return %arg0, %c0_i32 : i32, i32
  }
}

</mosaic_0001>

<llo_original>
// kernel: encoder_layer_forward.5
$region0: #{encoder_layer_forward.5}
  #allocation0 [shape = 'u32[]', space=smem, size = 0x4, offset = 0x4, fixed_abs, tag = 'smem constant byte address 0x4 - core index']
  #allocation1 [shape = 'u32[144,128]{1,0:T(1,128)}', space=vmem, size = 0x12000, scoped, tag = 'internal scratch']
  #allocation2 [shape = 'f32[2,32]{1,0:T(2,128)}', space=vmem, size = 0x400, scoped, tag = 'scratch operand']
  %s0 = inlined_call_operand.vmem [shape: f32[8,2,32], index: 0, kind: input, shape index: {}]
  %s1 = inlined_call_operand.vmem [shape: f32[32,8], index: 1, kind: input, shape index: {}]
  %s2 = inlined_call_operand.vmem [shape: f32[8,32], index: 2, kind: input, shape index: {}]
  %s3 = inlined_call_operand.vmem [shape: f32[2,32], index: 3, kind: output, shape index: {}]
  %s4 = sld [smem:[#allocation0]]
  $region30: #{encoder_layer_forward.5} parent=0
    _
  %s6 = ssub.s32 1, %s4
  %s7 = scalar_select 0, %s6, %s4
  // Predicated region
  $region2: #{encoder_layer_forward.5} parent=0 // pred_check
    _
  $region3: #{encoder_layer_forward.5} parent=0 // pred_check_branch
    %9 = sbr.rel (0) target = $region5
  $region4: #{encoder_layer_forward.5} parent=0 // pred_region
    _
  $region5: #{encoder_layer_forward.5} parent=0 // pred_fallthru
    _
  // Predicated region
  $region6: #{encoder_layer_forward.5} parent=0 // pred_check
    _
  $region7: #{encoder_layer_forward.5} parent=0 // pred_check_branch
    %11 = sbr.rel (0) target = $region9
  $region8: #{encoder_layer_forward.5} parent=0 // pred_region
    _
  $region9: #{encoder_layer_forward.5} parent=0 // pred_fallthru
    _
  // Predicated region
  $region10: #{encoder_layer_forward.5} parent=0 // pred_check
    _
  $region11: #{encoder_layer_forward.5} parent=0 // pred_check_branch
    %13 = sbr.rel (0) target = $region13
  $region12: #{encoder_layer_forward.5} parent=0 // pred_region
    _
  $region13: #{encoder_layer_forward.5} parent=0 // pred_fallthru
    _
  %p14 = scmp.eq.s32.totalorder 0, 0
  // Predicated region
  $region14: #{encoder_layer_forward.5} parent=0 // pred_check
    %p15 = pneg %p14
  $region15: #{encoder_layer_forward.5} parent=0 // pred_check_branch
    %17 = sbr.rel (%p15) target = $region17
  $region16: #{encoder_layer_forward.5} parent=0 // pred_region
    %vm18 = vcmask 254976
    %19 = vst.msk [vmem:[#allocation2] sm:$0x3] %vm18, 0.0
  $region17: #{encoder_layer_forward.5} parent=0 // pred_fallthru
    _
  %v20 = vld [vmem:[#allocation2] sm:$0x3]
  %v21 = vld [vmem:[%s0] sm:$0x3]
  %v22 = vld [vmem:[%s0 + $0x2] sm:$0x3]
  %v23 = vld [vmem:[%s0 + $0x4] sm:$0x3]
  %v24 = vld [vmem:[%s0 + $0x6] sm:$0x3]
  %v25 = vld [vmem:[%s0 + $0x8] sm:$0x3]
  %v26 = vld [vmem:[%s0 + $0xa] sm:$0x3]
  %v27 = vld [vmem:[%s0 + $0xc] sm:$0x3]
  %v28 = vld [vmem:[%s0 + $0xe] sm:$0x3]
  %vm29 = vcmask 254976
  %v30 = vsel %vm29, %v21, 0.0
  %v31 = vsel %vm29, %v22, 0.0
  %v32 = vadd.f32 %v30, %v31
  %v33 = vsel %vm29, %v23, 0.0
  %v34 = vadd.f32 %v32, %v33
  %v35 = vsel %vm29, %v24, 0.0
  %v36 = vadd.f32 %v34, %v35
  %v37 = vsel %vm29, %v25, 0.0
  %v38 = vadd.f32 %v36, %v37
  %v39 = vsel %vm29, %v26, 0.0
  %v40 = vadd.f32 %v38, %v39
  %v41 = vsel %vm29, %v27, 0.0
  %v42 = vadd.f32 %v40, %v41
  %v43 = vsel %vm29, %v28, 0.0
  %v44 = vadd.f32 %v42, %v43
  %v45 = vadd.f32 %v20, %v44
  %46 = vst.msk [vmem:[#allocation2] sm:$0x3] %vm29, %v45
  // Predicated region
  $region18: #{encoder_layer_forward.5} parent=0 // pred_check
    %p47 = pneg %p14
  $region19: #{encoder_layer_forward.5} parent=0 // pred_check_branch
    %49 = sbr.rel (%p47) target = $region21
  $region20: #{encoder_layer_forward.5} parent=0 // pred_region
    %v50 = vld [vmem:[#allocation2] sm:$0x3]
    %v51 = vmul.f32 %v50, 0.125
    %v52 = vld [vmem:[%s1] sm:$0xff]
    %v53 = vld [vmem:[%s1 + $0x8] sm:$0xff]
    %v54 = vld [vmem:[%s1 + $0x10] sm:$0xff]
    %v55 = vld [vmem:[%s1 + $0x18] sm:$0xff]
    %vm56 = vcmask 261120
    %v58 = vsel %vm56, %v51, 0
    %60 = vmatprep.subr.mxu0 0.0
    %61 = vmatpush1.msra.mxu0 %v52
    %62 = vmatprep.subr.mxu0 0.0
    %63 = vmatpush1.msra.mxu0 %v53
    %64 = vmatprep.subr.mxu0 0.0
    %65 = vmatpush1.msra.mxu0 %v54
    %66 = vmatprep.subr.mxu0 0.0
    %67 = vmatpush1.msra.mxu0 %v55
    %68 = vmatprep.subr.mxu0 0.0
    %69 = vmatpush1.msra.mxu0 0.0
    %70 = vmatprep.subr.mxu0 0.0
    %71 = vmatpush1.msra.mxu0 0.0
    %72 = vmatprep.subr.mxu0 0.0
    %73 = vmatpush1.msra.mxu0 0.0
    %74 = vmatprep.subr.mxu0 0.0
    %75 = vmatpush1.msra.mxu0 0.0
    %76 = vmatprep.subr.mxu0 0.0
    %77 = vmatpush1.msra.mxu0 0.0
    %78 = vmatprep.subr.mxu0 0.0
    %79 = vmatpush1.msra.mxu0 0.0
    %80 = vmatprep.subr.mxu0 0.0
    %81 = vmatpush1.msra.mxu0 0.0
    %82 = vmatprep.subr.mxu0 0.0
    %83 = vmatpush1.msra.mxu0 0.0
    %84 = vmatprep.subr.mxu0 0.0
    %85 = vmatpush1.msra.mxu0 0.0
    %86 = vmatprep.subr.mxu0 0.0
    %87 = vmatpush1.msra.mxu0 0.0
    %88 = vmatprep.subr.mxu0 0.0
    %89 = vmatpush1.msra.mxu0 0.0
    %90 = vmatprep.subr.mxu0 0.0
    %91 = vmatpush1.msra.mxu0 0.0
    %92 = vmatprep.subr.mxu0 0.0
    %93 = vmatpush1.msra.mxu0 0.0
    %94 = vmatprep.subr.mxu0 0.0
    %95 = vmatpush1.msra.mxu0 0.0
    %96 = vmatprep.subr.mxu0 0.0
    %97 = vmatpush1.msra.mxu0 0.0
    %98 = vmatprep.subr.mxu0 0.0
    %99 = vmatpush1.msra.mxu0 0.0
    %100 = vmatprep.subr.mxu0 0.0
    %101 = vmatpush1.msra.mxu0 0.0
    %102 = vmatprep.subr.mxu0 0.0
    %103 = vmatpush1.msra.mxu0 0.0
    %104 = vmatprep.subr.mxu0 0.0
    %105 = vmatpush1.msra.mxu0 0.0
    %106 = vmatprep.subr.mxu0 0.0
    %107 = vmatpush1.msra.mxu0 0.0
    %108 = vmatprep.subr.mxu0 0.0
    %109 = vmatpush1.msra.mxu0 0.0
    %110 = vmatprep.subr.mxu0 0.0
    %111 = vmatpush1.msra.mxu0 0.0
    %112 = vmatprep.subr.mxu0 0.0
    %113 = vmatpush1.msra.mxu0 0.0
    %114 = vmatprep.subr.mxu0 0.0
    %115 = vmatpush1.msra.mxu0 0.0
    %116 = vmatprep.subr.mxu0 0.0
    %117 = vmatpush1.msra.mxu0 0.0
    %118 = vmatprep.subr.mxu0 0.0
    %119 = vmatpush1.msra.mxu0 0.0
    %120 = vmatprep.subr.mxu0 0.0
    %121 = vmatpush1.msra.mxu0 0.0
    %122 = vmatprep.subr.mxu0 0.0
    %123 = vmatpush1.msra.mxu0 0.0
    %124 = vmatprep.mubr.f32.mxu0 0.0
    %125 = vmatmul.mubr.f32.gmra.mrb[0].mxu0 %v58
    %v126 = vpop.f32.mrb[0].mxu0
    %v127 = vadd.f32 0.0, %v126
    %v128 = vpop.f32.mrb[0].mxu0
    %129 = vdwg.mxu0
    %v130 = vmax.f32 %v127, 0.0
    %v131 = vld [vmem:[%s2] sm:$0xff]
    %vm132 = vcmask 64512
    %v134 = vsel %vm132, %v130, 0
    %136 = vmatprep.subr.mxu0 0.0
    %137 = vmatpush1.msra.mxu0 %v131
    %138 = vmatprep.subr.mxu0 0.0
    %139 = vmatpush1.msra.mxu0 0.0
    %140 = vmatprep.subr.mxu0 0.0
    %141 = vmatpush1.msra.mxu0 0.0
    %142 = vmatprep.subr.mxu0 0.0
    %143 = vmatpush1.msra.mxu0 0.0
    %144 = vmatprep.subr.mxu0 0.0
    %145 = vmatpush1.msra.mxu0 0.0
    %146 = vmatprep.subr.mxu0 0.0
    %147 = vmatpush1.msra.mxu0 0.0
    %148 = vmatprep.subr.mxu0 0.0
    %149 = vmatpush1.msra.mxu0 0.0
    %150 = vmatprep.subr.mxu0 0.0
    %151 = vmatpush1.msra.mxu0 0.0
    %152 = vmatprep.subr.mxu0 0.0
    %153 = vmatpush1.msra.mxu0 0.0
    %154 = vmatprep.subr.mxu0 0.0
    %155 = vmatpush1.msra.mxu0 0.0
    %156 = vmatprep.subr.mxu0 0.0
    %157 = vmatpush1.msra.mxu0 0.0
    %158 = vmatprep.subr.mxu0 0.0
    %159 = vmatpush1.msra.mxu0 0.0
    %160 = vmatprep.subr.mxu0 0.0
    %161 = vmatpush1.msra.mxu0 0.0
    %162 = vmatprep.subr.mxu0 0.0
    %163 = vmatpush1.msra.mxu0 0.0
    %164 = vmatprep.subr.mxu0 0.0
    %165 = vmatpush1.msra.mxu0 0.0
    %166 = vmatprep.subr.mxu0 0.0
    %167 = vmatpush1.msra.mxu0 0.0
    %168 = vmatprep.subr.mxu0 0.0
    %169 = vmatpush1.msra.mxu0 0.0
    %170 = vmatprep.subr.mxu0 0.0
    %171 = vmatpush1.msra.mxu0 0.0
    %172 = vmatprep.subr.mxu0 0.0
    %173 = vmatpush1.msra.mxu0 0.0
    %174 = vmatprep.subr.mxu0 0.0
    %175 = vmatpush1.msra.mxu0 0.0
    %176 = vmatprep.subr.mxu0 0.0
    %177 = vmatpush1.msra.mxu0 0.0
    %178 = vmatprep.subr.mxu0 0.0
    %179 = vmatpush1.msra.mxu0 0.0
    %180 = vmatprep.subr.mxu0 0.0
    %181 = vmatpush1.msra.mxu0 0.0
    %182 = vmatprep.subr.mxu0 0.0
    %183 = vmatpush1.msra.mxu0 0.0
    %184 = vmatprep.subr.mxu0 0.0
    %185 = vmatpush1.msra.mxu0 0.0
    %186 = vmatprep.subr.mxu0 0.0
    %187 = vmatpush1.msra.mxu0 0.0
    %188 = vmatprep.subr.mxu0 0.0
    %189 = vmatpush1.msra.mxu0 0.0
    %190 = vmatprep.subr.mxu0 0.0
    %191 = vmatpush1.msra.mxu0 0.0
    %192 = vmatprep.subr.mxu0 0.0
    %193 = vmatpush1.msra.mxu0 0.0
    %194 = vmatprep.subr.mxu0 0.0
    %195 = vmatpush1.msra.mxu0 0.0
    %196 = vmatprep.subr.mxu0 0.0
    %197 = vmatpush1.msra.mxu0 0.0
    %198 = vmatprep.subr.mxu0 0.0
    %199 = vmatpush1.msra.mxu0 0.0
    %200 = vmatprep.mubr.f32.mxu0 0.0
    %201 = vmatmul.mubr.f32.gmra.mrb[0].mxu0 %v134
    %v202 = vpop.f32.mrb[0].mxu0
    %v203 = vadd.f32 0.0, %v202
    %v204 = vpop.f32.mrb[0].mxu0
    %205 = vdwg.mxu0
    %v206 = vsub.f32 0.0, %v203
    %v207 = vmul.f32 %v206, 1.442695
    %v208 = vpow.pop %v207
    %v209 = vadd.f32 %v208, 1.0
    %v210 = vrcp.pop %v209
    %v211 = vmul.f32 1.0, %v210
    %212 = vst.msk [vmem:[%s3] sm:$0x3] %vm29, %v211
  $region21: #{encoder_layer_forward.5} parent=0 // pred_fallthru
    _
  // Predicated region
  $region22: #{encoder_layer_forward.5} parent=0 // pred_check
    _
  $region23: #{encoder_layer_forward.5} parent=0 // pred_check_branch
    %214 = sbr.rel (0) target = $region25
  $region24: #{encoder_layer_forward.5} parent=0 // pred_region
    _
  $region25: #{encoder_layer_forward.5} parent=0 // pred_fallthru
    _
  // Predicated region
  $region26: #{encoder_layer_forward.5} parent=0 // pred_check
    _
  $region27: #{encoder_layer_forward.5} parent=0 // pred_check_branch
    %216 = sbr.rel (0) target = $region29
  $region28: #{encoder_layer_forward.5} parent=0 // pred_region
    _
  $region29: #{encoder_layer_forward.5} parent=0 // pred_fallthru
    _

// kernel: encoder_layer_forward.6
$region0: #{encoder_layer_forward.6}
  #allocation0 [shape = 'u32[]', space=smem, size = 0x4, offset = 0x4, fixed_abs, tag = 'smem constant byte address 0x4 - core index']
  #allocation1 [shape = 'u32[144,128]{1,0:T(1,128)}', space=vmem, size = 0x12000, scoped, tag = 'internal scratch']
  #allocation2 [shape = 'f32[16,96]{1,0:T(8,128)}', space=vmem, size = 0x2000, scoped, tag = 'scratch operand']
  %s0 = inlined_call_operand.vmem [shape: f32[16,32], index: 0, kind: input, shape index: {}]
  %s1 = inlined_call_operand.vmem [shape: f32[32,96], index: 1, kind: input, shape index: {}]
  %s2 = inlined_call_operand.vmem [shape: f32[1,96], index: 2, kind: input, shape index: {}]
  %s3 = inlined_call_operand.vmem [shape: f32[16,96], index: 3, kind: output, shape index: {}]
  %s4 = sld [smem:[#allocation0]]
  $region30: #{encoder_layer_forward.6} parent=0
    _
  %s6 = ssub.s32 1, %s4
  %s7 = scalar_select 0, %s6, %s4
  // Predicated region
  $region2: #{encoder_layer_forward.6} parent=0 // pred_check
    _
  $region3: #{encoder_layer_forward.6} parent=0 // pred_check_branch
    %9 = sbr.rel (0) target = $region5
  $region4: #{encoder_layer_forward.6} parent=0 // pred_region
    _
  $region5: #{encoder_layer_forward.6} parent=0 // pred_fallthru
    _
  // Predicated region
  $region6: #{encoder_layer_forward.6} parent=0 // pred_check
    _
  $region7: #{encoder_layer_forward.6} parent=0 // pred_check_branch
    %11 = sbr.rel (0) target = $region9
  $region8: #{encoder_layer_forward.6} parent=0 // pred_region
    _
  $region9: #{encoder_layer_forward.6} parent=0 // pred_fallthru
    _
  // Predicated region
  $region10: #{encoder_layer_forward.6} parent=0 // pred_check
    _
  $region11: #{encoder_layer_forward.6} parent=0 // pred_check_branch
    %13 = sbr.rel (0) target = $region13
  $region12: #{encoder_layer_forward.6} parent=0 // pred_region
    _
  $region13: #{encoder_layer_forward.6} parent=0 // pred_fallthru
    _
  %p14 = scmp.eq.s32.totalorder 0, 0
  // Predicated region
  $region14: #{encoder_layer_forward.6} parent=0 // pred_check
    %p15 = pneg %p14
  $region15: #{encoder_layer_forward.6} parent=0 // pred_check_branch
    %17 = sbr.rel (%p15) target = $region17
  $region16: #{encoder_layer_forward.6} parent=0 // pred_region
    %vm18 = vcmask 785408
    %19 = vst.msk [vmem:[#allocation2] sm:$0xff] %vm18, 0.0
    %20 = vst.msk [vmem:[#allocation2 + $0x8] sm:$0xff] %vm18, 0.0
  $region17: #{encoder_layer_forward.6} parent=0 // pred_fallthru
    _
  %v21 = vld [vmem:[#allocation2] sm:$0xff]
  %v22 = vld [vmem:[#allocation2 + $0x8] sm:$0xff]
  %v23 = vld [vmem:[%s0] sm:$0xff]
  %v24 = vld [vmem:[%s0 + $0x8] sm:$0xff]
  %v25 = vld [vmem:[%s1] sm:$0xff]
  %v26 = vld [vmem:[%s1 + $0x8] sm:$0xff]
  %v27 = vld [vmem:[%s1 + $0x10] sm:$0xff]
  %v28 = vld [vmem:[%s1 + $0x18] sm:$0xff]
  %vm29 = vcmask 261120
  %v31 = vsel %vm29, %v23, 0
  %v34 = vsel %vm29, %v24, 0
  %36 = vmatprep.subr.mxu0 0.0
  %37 = vmatpush1.msra.mxu0 %v25
  %38 = vmatprep.subr.mxu0 0.0
  %39 = vmatpush1.msra.mxu0 %v26
  %40 = vmatprep.subr.mxu0 0.0
  %41 = vmatpush1.msra.mxu0 %v27
  %42 = vmatprep.subr.mxu0 0.0
  %43 = vmatpush1.msra.mxu0 %v28
  %44 = vmatprep.subr.mxu0 0.0
  %45 = vmatpush1.msra.mxu0 0.0
  %46 = vmatprep.subr.mxu0 0.0
  %47 = vmatpush1.msra.mxu0 0.0
  %48 = vmatprep.subr.mxu0 0.0
  %49 = vmatpush1.msra.mxu0 0.0
  %50 = vmatprep.subr.mxu0 0.0
  %51 = vmatpush1.msra.mxu0 0.0
  %52 = vmatprep.subr.mxu0 0.0
  %53 = vmatpush1.msra.mxu0 0.0
  %54 = vmatprep.subr.mxu0 0.0
  %55 = vmatpush1.msra.mxu0 0.0
  %56 = vmatprep.subr.mxu0 0.0
  %57 = vmatpush1.msra.mxu0 0.0
  %58 = vmatprep.subr.mxu0 0.0
  %59 = vmatpush1.msra.mxu0 0.0
  %60 = vmatprep.subr.mxu0 0.0
  %61 = vmatpush1.msra.mxu0 0.0
  %62 = vmatprep.subr.mxu0 0.0
  %63 = vmatpush1.msra.mxu0 0.0
  %64 = vmatprep.subr.mxu0 0.0
  %65 = vmatpush1.msra.mxu0 0.0
  %66 = vmatprep.subr.mxu0 0.0
  %67 = vmatpush1.msra.mxu0 0.0
  %68 = vmatprep.subr.mxu0 0.0
  %69 = vmatpush1.msra.mxu0 0.0
  %70 = vmatprep.subr.mxu0 0.0
  %71 = vmatpush1.msra.mxu0 0.0
  %72 = vmatprep.subr.mxu0 0.0
  %73 = vmatpush1.msra.mxu0 0.0
  %74 = vmatprep.subr.mxu0 0.0
  %75 = vmatpush1.msra.mxu0 0.0
  %76 = vmatprep.subr.mxu0 0.0
  %77 = vmatpush1.msra.mxu0 0.0
  %78 = vmatprep.subr.mxu0 0.0
  %79 = vmatpush1.msra.mxu0 0.0
  %80 = vmatprep.subr.mxu0 0.0
  %81 = vmatpush1.msra.mxu0 0.0
  %82 = vmatprep.subr.mxu0 0.0
  %83 = vmatpush1.msra.mxu0 0.0
  %84 = vmatprep.subr.mxu0 0.0
  %85 = vmatpush1.msra.mxu0 0.0
  %86 = vmatprep.subr.mxu0 0.0
  %87 = vmatpush1.msra.mxu0 0.0
  %88 = vmatprep.subr.mxu0 0.0
  %89 = vmatpush1.msra.mxu0 0.0
  %90 = vmatprep.subr.mxu0 0.0
  %91 = vmatpush1.msra.mxu0 0.0
  %92 = vmatprep.subr.mxu0 0.0
  %93 = vmatpush1.msra.mxu0 0.0
  %94 = vmatprep.subr.mxu0 0.0
  %95 = vmatpush1.msra.mxu0 0.0
  %96 = vmatprep.subr.mxu0 0.0
  %97 = vmatpush1.msra.mxu0 0.0
  %98 = vmatprep.subr.mxu0 0.0
  %99 = vmatpush1.msra.mxu0 0.0
  %100 = vmatprep.mubr.f32.mxu0 0.0
  %101 = vmatmul.mubr.f32.gmra.mrb[0].mxu0 %v31
  %v102 = vpop.f32.mrb[0].mxu0
  %v103 = vadd.f32 0.0, %v102
  %v104 = vpop.f32.mrb[0].mxu0
  %105 = vmatprep.mubr.f32.mxu0 0.0
  %106 = vmatmul.mubr.f32.gmra.mrb[0].mxu0 %v34
  %v107 = vpop.f32.mrb[0].mxu0
  %v108 = vadd.f32 0.0, %v107
  %v109 = vpop.f32.mrb[0].mxu0
  %110 = vdwg.mxu0
  %v111 = vadd.f32 %v21, %v103
  %v112 = vadd.f32 %v22, %v108
  %vm113 = vcmask 785408
  %114 = vst.msk [vmem:[#allocation2] sm:$0xff] %vm113, %v111
  %115 = vst.msk [vmem:[#allocation2 + $0x8] sm:$0xff] %vm113, %v112
  // Predicated region
  $region18: #{encoder_layer_forward.6} parent=0 // pred_check
    %p116 = pneg %p14
  $region19: #{encoder_layer_forward.6} parent=0 // pred_check_branch
    %118 = sbr.rel (%p116) target = $region21
  $region20: #{encoder_layer_forward.6} parent=0 // pred_region
    %v119 = vld [vmem:[#allocation2] sm:$0xff]
    %v120 = vld [vmem:[#allocation2 + $0x8] sm:$0xff]
    %v121 = vld [vmem:[%s2] sm:$0x1]
    %v123 = vlaneseq
    %v124 = vshrl.u32 %v123, 7
    %v125 = vsub.s32 0, %v124
    %v126 = vrot.slane %v121, %v125
    %v128 = vadd.f32 %v119, %v126
    %v129 = vadd.f32 %v120, %v126
    %130 = vst.msk [vmem:[%s3] sm:$0xff] %vm113, %v128
    %131 = vst.msk [vmem:[%s3 + $0x8] sm:$0xff] %vm113, %v129
  $region21: #{encoder_layer_forward.6} parent=0 // pred_fallthru
    _
  // Predicated region
  $region22: #{encoder_layer_forward.6} parent=0 // pred_check
    _
  $region23: #{encoder_layer_forward.6} parent=0 // pred_check_branch
    %133 = sbr.rel (0) target = $region25
  $region24: #{encoder_layer_forward.6} parent=0 // pred_region
    _
  $region25: #{encoder_layer_forward.6} parent=0 // pred_fallthru
    _
  // Predicated region
  $region26: #{encoder_layer_forward.6} parent=0 // pred_check
    _
  $region27: #{encoder_layer_forward.6} parent=0 // pred_check_branch
    %135 = sbr.rel (0) target = $region29
  $region28: #{encoder_layer_forward.6} parent=0 // pred_region
    _
  $region29: #{encoder_layer_forward.6} parent=0 // pred_fallthru
    _

// kernel: encoder_layer_forward.7
$region0: #{encoder_layer_forward.7}
  #allocation0 [shape = 'u32[]', space=smem, size = 0x4, offset = 0x4, fixed_abs, tag = 'smem constant byte address 0x4 - core index']
  #allocation1 [shape = 'u32[144,128]{1,0:T(1,128)}', space=vmem, size = 0x12000, scoped, tag = 'internal scratch']
  #allocation2 [shape = 'f32[1,8,1]{2,1,0:T(8,128)}', space=vmem, size = 0x1000, scoped, tag = 'scratch operand']
  #allocation3 [shape = 'f32[1,8,1]{2,1,0:T(8,128)}', space=vmem, size = 0x1000, scoped, tag = 'scratch operand']
  #allocation4 [shape = 'f32[1,8,8]{2,1,0:T(8,128)}', space=vmem, size = 0x1000, scoped, tag = 'scratch operand']
  %s0 = inlined_call_operand.vmem [shape: f32[8,8,8], index: 0, kind: input, shape index: {}]
  %s1 = inlined_call_operand.vmem [shape: f32[8,8,8], index: 1, kind: input, shape index: {}]
  %s2 = inlined_call_operand.vmem [shape: f32[8,8,8], index: 2, kind: input, shape index: {}]
  %s3 = inlined_call_operand.vmem [shape: f32[8,8,8], index: 3, kind: output, shape index: {}]
  %s4 = sld [smem:[#allocation0]]
  $region53: #{encoder_layer_forward.7} parent=0
    _
  %s6 = ssub.s32 1, %s4
  %s7 = scalar_select 0, %s6, %s4
  loop: start=0, step=1, limit=10
  $region2: #{encoder_layer_forward.7} parent=0 // loop_pre_header
    _
  $region3: #{encoder_layer_forward.7} parent=0 // loop_header
    %s9 = sphi 0, %s13
    %p10 = scmp.ge.s32.totalorder %s9, 10
    %s16 = sphi 0, %s35
    %s17 = sphi 0, %s31
    %s18 = sphi 0, %s27
    %s19 = sphi 0, %s16
    %s20 = sphi 0, %s17
    %s21 = sphi 0, %s18
    %s22 = sphi 0, %s19
    %s23 = sphi 0, %s20
    %s24 = sphi 0, %s21
    %s40 = sphi 0, %s42
    %s43 = sphi 0, %s40
    %s44 = sphi 0, %s43
    %s60 = sphi 0, %s44
    %s68 = sphi 0, %s70
    %s71 = sphi 0, %s68
    %s72 = sphi 0, %s71
    %s88 = sphi 0, %s72
    %s96 = sphi 0, %s98
    %s99 = sphi 0, %s96
    %s100 = sphi 0, %s99
    %s116 = sphi 0, %s100
    %s124 = sphi 0, %s126
    %s127 = sphi 0, %s124
    %s128 = sphi 0, %s127
    %s144 = sphi 0, %s128
  $region4: #{encoder_layer_forward.7} parent=0 // loop_header_branch
    %12 = sbr.rel (%p10) target = $region8
  $region5: #{encoder_layer_forward.7} parent=0 // loop_body
    %s14 = ssub.s32 %s9, 1
    %s15 = ssub.s32 %s9, 2
    %s25 = sadd.s32 1, %s18
    %p26 = scmp.ge.s32.totalorder %s25, 1
    %s27 = scalar_select %p26, 0, %s25
    %s28 = sadd.s32 1, %s17
    %s29 = scalar_select %p26, %s28, %s17
    %p30 = scmp.ge.s32.totalorder %s29, 1
    %s31 = scalar_select %p30, 0, %s29
    %s32 = sadd.s32 1, %s16
    %s33 = scalar_select %p30, %s32, %s16
    %p34 = scmp.ge.s32.totalorder %s33, 8
    %s35 = scalar_select %p34, 0, %s33
    %s36 = ssub.s32 %s16, %s35
    %s37 = ssub.s32 %s17, %s31
    %s38 = sor.u32 %s36, %s37
    %p39 = scmp.eq.s32.totalorder %s38, 0
    %s41 = sadd.s32 %s40, 1
    %s42 = scalar_select %p39, %s40, %s41
    %p45 = pneg %p39
    %p46 = scmp.eq.s32.totalorder %s9, 7
    %p47 = por %p45, %p46
    %p48 = scmp.ne.s32.totalorder %s40, %s43
    %p49 = scmp.eq.s32.totalorder %s9, 0
    %p50 = por %p48, %p49
    %p51 = scmp.ne.s32.totalorder %s40, %s43
    %p52 = scmp.eq.s32.totalorder %s14, 7
    %p53 = por %p51, %p52
    %p54 = scmp.ne.s32.totalorder %s43, %s44
    %p55 = scmp.eq.s32.totalorder %s14, 0
    %p56 = por %p54, %p55
    %p57 = scmp.ne.s32.totalorder %s43, %s44
    %p58 = scmp.eq.s32.totalorder %s15, 7
    %p59 = por %p57, %p58
    %p61 = scmp.ne.s32.totalorder %s44, %s60
    %p62 = scmp.eq.s32.totalorder %s15, 0
    %p63 = por %p61, %p62
    %s64 = ssub.s32 %s16, %s35
    %s65 = ssub.s32 %s18, %s27
    %s66 = sor.u32 %s64, %s65
    %p67 = scmp.eq.s32.totalorder %s66, 0
    %s69 = sadd.s32 %s68, 1
    %s70 = scalar_select %p67, %s68, %s69
    %p73 = pneg %p67
    %p74 = scmp.eq.s32.totalorder %s9, 7
    %p75 = por %p73, %p74
    %p76 = scmp.ne.s32.totalorder %s68, %s71
    %p77 = scmp.eq.s32.totalorder %s9, 0
    %p78 = por %p76, %p77
    %p79 = scmp.ne.s32.totalorder %s68, %s71
    %p80 = scmp.eq.s32.totalorder %s14, 7
    %p81 = por %p79, %p80
    %p82 = scmp.ne.s32.totalorder %s71, %s72
    %p83 = scmp.eq.s32.totalorder %s14, 0
    %p84 = por %p82, %p83
    %p85 = scmp.ne.s32.totalorder %s71, %s72
    %p86 = scmp.eq.s32.totalorder %s15, 7
    %p87 = por %p85, %p86
    %p89 = scmp.ne.s32.totalorder %s72, %s88
    %p90 = scmp.eq.s32.totalorder %s15, 0
    %p91 = por %p89, %p90
    %s92 = ssub.s32 %s16, %s35
    %s93 = ssub.s32 %s18, %s27
    %s94 = sor.u32 %s92, %s93
    %p95 = scmp.eq.s32.totalorder %s94, 0
    %s97 = sadd.s32 %s96, 1
    %s98 = scalar_select %p95, %s96, %s97
    %p101 = pneg %p95
    %p102 = scmp.eq.s32.totalorder %s9, 7
    %p103 = por %p101, %p102
    %p104 = scmp.ne.s32.totalorder %s96, %s99
    %p105 = scmp.eq.s32.totalorder %s9, 0
    %p106 = por %p104, %p105
    %p107 = scmp.ne.s32.totalorder %s96, %s99
    %p108 = scmp.eq.s32.totalorder %s14, 7
    %p109 = por %p107, %p108
    %p110 = scmp.ne.s32.totalorder %s99, %s100
    %p111 = scmp.eq.s32.totalorder %s14, 0
    %p112 = por %p110, %p111
    %p113 = scmp.ne.s32.totalorder %s99, %s100
    %p114 = scmp.eq.s32.totalorder %s15, 7
    %p115 = por %p113, %p114
    %p117 = scmp.ne.s32.totalorder %s100, %s116
    %p118 = scmp.eq.s32.totalorder %s15, 0
    %p119 = por %p117, %p118
    %s120 = ssub.s32 %s16, %s35
    %s121 = ssub.s32 %s17, %s31
    %s122 = sor.u32 %s120, %s121
    %p123 = scmp.eq.s32.totalorder %s122, 0
    %s125 = sadd.s32 %s124, 1
    %s126 = scalar_select %p123, %s124, %s125
    %p129 = pneg %p123
    %p130 = scmp.eq.s32.totalorder %s9, 7
    %p131 = por %p129, %p130
    %p132 = scmp.ne.s32.totalorder %s124, %s127
    %p133 = scmp.eq.s32.totalorder %s9, 0
    %p134 = por %p132, %p133
    %p135 = scmp.ne.s32.totalorder %s124, %s127
    %p136 = scmp.eq.s32.totalorder %s14, 7
    %p137 = por %p135, %p136
    %p138 = scmp.ne.s32.totalorder %s127, %s128
    %p139 = scmp.eq.s32.totalorder %s14, 0
    %p140 = por %p138, %p139
    %p141 = scmp.ne.s32.totalorder %s127, %s128
    %p142 = scmp.eq.s32.totalorder %s15, 7
    %p143 = por %p141, %p142
    %p145 = scmp.ne.s32.totalorder %s128, %s144
    %p146 = scmp.eq.s32.totalorder %s15, 0
    %p147 = por %p145, %p146
    %p148 = scmp.le.s32.totalorder 1, %s9
    %p149 = scmp.lt.s32.totalorder %s9, 9
    %p150 = pnand %p148, %p149
    %p151 = pneg %p150
    // Predicated region
    $region9: #{encoder_layer_forward.7} parent=5 // pred_check
      _
    $region10: #{encoder_layer_forward.7} parent=5 // pred_check_branch
      %153 = sbr.rel (%p150) target = $region12
    $region11: #{encoder_layer_forward.7} parent=5 // pred_region
      %s154 = ssub.s32 %s9, 1
    $region12: #{encoder_layer_forward.7} parent=5 // pred_fallthru
      _
    %p155 = scmp.lt.s32.totalorder %s9, 8
    // Predicated region
    $region13: #{encoder_layer_forward.7} parent=5 // pred_check
      %p156 = pneg %p155
    $region14: #{encoder_layer_forward.7} parent=5 // pred_check_branch
      %158 = sbr.rel (%p156) target = $region16
    $region15: #{encoder_layer_forward.7} parent=5 // pred_region
      // Predicated region
      $region17: #{encoder_layer_forward.7} parent=15 // pred_check
        %p159 = pneg %p50
      $region18: #{encoder_layer_forward.7} parent=15 // pred_check_branch
        %161 = sbr.rel (%p159) target = $region20
      $region19: #{encoder_layer_forward.7} parent=15 // pred_region
        %p162 = scmp.lt.s32.totalorder %s16, 7
        %s163 = scalar_select %p162, %s16, 7
        %p164 = scmp.lt.s32.totalorder %s17, 0
        %s165 = scalar_select %p164, %s17, 0
        %s166 = sadd.s32 %s165, %s163
        %s167 = smul.addr %s166, 8
        %s168 = scalar_lea.vmem %s0, %s167
      $region20: #{encoder_layer_forward.7} parent=15 // pred_fallthru
        _
      // Predicated region
      $region21: #{encoder_layer_forward.7} parent=15 // pred_check
        %p169 = pneg %p78
      $region22: #{encoder_layer_forward.7} parent=15 // pred_check_branch
        %171 = sbr.rel (%p169) target = $region24
      $region23: #{encoder_layer_forward.7} parent=15 // pred_region
        %p172 = scmp.lt.s32.totalorder %s16, 7
        %s173 = scalar_select %p172, %s16, 7
        %p174 = scmp.lt.s32.totalorder %s18, 0
        %s175 = scalar_select %p174, %s18, 0
        %s176 = sadd.s32 %s175, %s173
        %s177 = smul.addr %s176, 8
        %s178 = scalar_lea.vmem %s1, %s177
      $region24: #{encoder_layer_forward.7} parent=15 // pred_fallthru
        _
      // Predicated region
      $region25: #{encoder_layer_forward.7} parent=15 // pred_check
        %p179 = pneg %p106
      $region26: #{encoder_layer_forward.7} parent=15 // pred_check_branch
        %181 = sbr.rel (%p179) target = $region28
      $region27: #{encoder_layer_forward.7} parent=15 // pred_region
        %p182 = scmp.lt.s32.totalorder %s16, 7
        %s183 = scalar_select %p182, %s16, 7
        %p184 = scmp.lt.s32.totalorder %s18, 0
        %s185 = scalar_select %p184, %s18, 0
        %s186 = sadd.s32 %s185, %s183
        %s187 = smul.addr %s186, 8
        %s188 = scalar_lea.vmem %s2, %s187
      $region28: #{encoder_layer_forward.7} parent=15 // pred_fallthru
        _
    $region16: #{encoder_layer_forward.7} parent=5 // pred_fallthru
      _
    %p189 = scmp.le.s32.totalorder 1, %s9
    %p190 = scmp.lt.s32.totalorder %s9, 9
    %p191 = pnand %p189, %p190
    %p192 = pneg %p191
    // Predicated region
    $region29: #{encoder_layer_forward.7} parent=5 // pred_check
      _
    $region30: #{encoder_layer_forward.7} parent=5 // pred_check_branch
      %194 = sbr.rel (%p191) target = $region32
    $region31: #{encoder_layer_forward.7} parent=5 // pred_region
      %s195 = ssub.s32 %s9, 1
      %p196 = scmp.lt.s32.totalorder %s19, 7
      %s197 = scalar_select %p196, %s19, 7
      %p198 = scmp.lt.s32.totalorder %s20, 0
      %s199 = scalar_select %p198, %s20, 0
      %s200 = sadd.s32 %s199, %s197
      %s201 = smul.addr %s200, 8
      %s202 = scalar_lea.vmem %s0, %s201
      %p203 = pneg %p56
      %p204 = pneg %p53
      %p205 = scmp.lt.s32.totalorder %s19, 7
      %s206 = scalar_select %p205, %s19, 7
      %p207 = scmp.lt.s32.totalorder %s21, 0
      %s208 = scalar_select %p207, %s21, 0
      %s209 = sadd.s32 %s208, %s206
      %s210 = smul.addr %s209, 8
      %s211 = scalar_lea.vmem %s1, %s210
      %p212 = pneg %p84
      %p213 = pneg %p81
      %p214 = scmp.lt.s32.totalorder %s19, 7
      %s215 = scalar_select %p214, %s19, 7
      %p216 = scmp.lt.s32.totalorder %s21, 0
      %s217 = scalar_select %p216, %s21, 0
      %s218 = sadd.s32 %s217, %s215
      %s219 = smul.addr %s218, 8
      %s220 = scalar_lea.vmem %s2, %s219
      %p221 = pneg %p112
      %p222 = pneg %p109
      %p223 = pneg %p140
      %p224 = pneg %p137
      %p225 = scmp.lt.s32.totalorder %s19, 7
      %s226 = scalar_select %p225, %s19, 7
      %p227 = scmp.lt.s32.totalorder %s20, 0
      %s228 = scalar_select %p227, %s20, 0
      %s229 = sadd.s32 %s228, %s226
      %s230 = smul.addr %s229, 8
      %s231 = scalar_lea.vmem %s3, %s230
      %p232 = scmp.lt.s32.totalorder %s19, 7
      %s233 = scalar_select %p232, %s19, 7
      %p234 = scmp.lt.s32.totalorder %s20, 0
      %s235 = scalar_select %p234, %s20, 0
      %s236 = sadd.s32 %s235, %s233
      %s237 = smul.addr %s236, 8
      %s238 = scalar_lea.vmem %s0, %s237
      %p239 = scmp.lt.s32.totalorder %s19, 7
      %s240 = scalar_select %p239, %s19, 7
      %p241 = scmp.lt.s32.totalorder %s21, 0
      %s242 = scalar_select %p241, %s21, 0
      %s243 = sadd.s32 %s242, %s240
      %s244 = smul.addr %s243, 8
      %s245 = scalar_lea.vmem %s1, %s244
      %p246 = scmp.lt.s32.totalorder %s19, 7
      %s247 = scalar_select %p246, %s19, 7
      %p248 = scmp.lt.s32.totalorder %s21, 0
      %s249 = scalar_select %p248, %s21, 0
      %s250 = sadd.s32 %s249, %s247
      %s251 = smul.addr %s250, 8
      %s252 = scalar_lea.vmem %s2, %s251
      %p253 = scmp.lt.s32.totalorder %s19, 7
      %s254 = scalar_select %p253, %s19, 7
      %p255 = scmp.lt.s32.totalorder %s20, 0
      %s256 = scalar_select %p255, %s20, 0
      %s257 = sadd.s32 %s256, %s254
      %s258 = smul.addr %s257, 8
      %s259 = scalar_lea.vmem %s3, %s258
      %p260 = scmp.eq.s32.totalorder %s21, 0
      // Predicated region
      $region33: #{encoder_layer_forward.7} parent=31 // pred_check
        %p261 = pneg %p260
      $region34: #{encoder_layer_forward.7} parent=31 // pred_check_branch
        %263 = sbr.rel (%p261) target = $region36
      $region35: #{encoder_layer_forward.7} parent=31 // pred_region
        %vm264 = vcmask 7168
        %265 = vst.msk [vmem:[#allocation2] sm:$0xff] %vm264, -inf
        %266 = vst.msk [vmem:[#allocation3] sm:$0xff] %vm264, 0.0
        %vm267 = vcmask 64512
        %268 = vst.msk [vmem:[#allocation4] sm:$0xff] %vm267, 0.0
      $region36: #{encoder_layer_forward.7} parent=31 // pred_fallthru
        _
      %v269 = vld [vmem:[%s238] sm:$0xff]
      %v270 = vld [vmem:[%s245] sm:$0xff]
      %v271 = vld [vmem:[%s252] sm:$0xff]
      %vm272 = vcmask 64512
      %v274 = vsel %vm272, %v269, 0
      %v277 = vsel %vm272, %v270, 0
      %279 = vmatprep.subr.mxu0 0.0
      %280 = vmatpush1.xpose.msra.mxu0 %v277
      %281 = vmatprep.subr.mxu0 0.0
      %282 = vmatpush1.xpose.msra.mxu0 0.0
      %283 = vmatprep.subr.mxu0 0.0
      %284 = vmatpush1.xpose.msra.mxu0 0.0
      %285 = vmatprep.subr.mxu0 0.0
      %286 = vmatpush1.xpose.msra.mxu0 0.0
      %287 = vmatprep.subr.mxu0 0.0
      %288 = vmatpush1.xpose.msra.mxu0 0.0
      %289 = vmatprep.subr.mxu0 0.0
      %290 = vmatpush1.xpose.msra.mxu0 0.0
      %291 = vmatprep.subr.mxu0 0.0
      %292 = vmatpush1.xpose.msra.mxu0 0.0
      %293 = vmatprep.subr.mxu0 0.0
      %294 = vmatpush1.xpose.msra.mxu0 0.0
      %295 = vmatprep.subr.mxu0 0.0
      %296 = vmatpush1.xpose.msra.mxu0 0.0
      %297 = vmatprep.subr.mxu0 0.0
      %298 = vmatpush1.xpose.msra.mxu0 0.0
      %299 = vmatprep.subr.mxu0 0.0
      %300 = vmatpush1.xpose.msra.mxu0 0.0
      %301 = vmatprep.subr.mxu0 0.0
      %302 = vmatpush1.xpose.msra.mxu0 0.0
      %303 = vmatprep.subr.mxu0 0.0
      %304 = vmatpush1.xpose.msra.mxu0 0.0
      %305 = vmatprep.subr.mxu0 0.0
      %306 = vmatpush1.xpose.msra.mxu0 0.0
      %307 = vmatprep.subr.mxu0 0.0
      %308 = vmatpush1.xpose.msra.mxu0 0.0
      %309 = vmatprep.subr.mxu0 0.0
      %310 = vmatpush1.xpose.msra.mxu0 0.0
      %311 = vmatprep.subr.mxu0 0.0
      %312 = vmatpush1.xpose.msra.mxu0 0.0
      %313 = vmatprep.subr.mxu0 0.0
      %314 = vmatpush1.xpose.msra.mxu0 0.0
      %315 = vmatprep.subr.mxu0 0.0
      %316 = vmatpush1.xpose.msra.mxu0 0.0
      %317 = vmatprep.subr.mxu0 0.0
      %318 = vmatpush1.xpose.msra.mxu0 0.0
      %319 = vmatprep.subr.mxu0 0.0
      %320 = vmatpush1.xpose.msra.mxu0 0.0
      %321 = vmatprep.subr.mxu0 0.0
      %322 = vmatpush1.xpose.msra.mxu0 0.0
      %323 = vmatprep.subr.mxu0 0.0
      %324 = vmatpush1.xpose.msra.mxu0 0.0
      %325 = vmatprep.subr.mxu0 0.0
      %326 = vmatpush1.xpose.msra.mxu0 0.0
      %327 = vmatprep.subr.mxu0 0.0
      %328 = vmatpush1.xpose.msra.mxu0 0.0
      %329 = vmatprep.subr.mxu0 0.0
      %330 = vmatpush1.xpose.msra.mxu0 0.0
      %331 = vmatprep.subr.mxu0 0.0
      %332 = vmatpush1.xpose.msra.mxu0 0.0
      %333 = vmatprep.subr.mxu0 0.0
      %334 = vmatpush1.xpose.msra.mxu0 0.0
      %335 = vmatprep.subr.mxu0 0.0
      %336 = vmatpush1.xpose.msra.mxu0 0.0
      %337 = vmatprep.subr.mxu0 0.0
      %338 = vmatpush1.xpose.msra.mxu0 0.0
      %339 = vmatprep.subr.mxu0 0.0
      %340 = vmatpush1.xpose.msra.mxu0 0.0
      %341 = vmatprep.subr.mxu0 0.0
      %342 = vmatpush1.xpose.msra.mxu0 0.0
      %343 = vmatprep.mubr.f32.mxu0 0.0
      %344 = vmatmul.mubr.f32.gmra.mrb[0].mxu0 %v274
      %v345 = vpop.f32.mrb[0].mxu0
      %v346 = vadd.f32 0.0, %v345
      %v347 = vpop.f32.mrb[0].mxu0
      %348 = vdwg.mxu0
      %v349 = vld [vmem:[#allocation2] sm:$0xff]
      %v350 = vsel %vm272, %v346, -inf
      %351 = vmax.xlane.f32.xlu0 %v350
      %v352 = vpop.xlane.xlu0 %351
      %v353 = vmax.f32 %v349, %v352
      %v354 = vsub.f32 %v349, %v353
      %v355 = vmul.f32 %v354, 1.442695
      %v356 = vpow.pop %v355
      %358 = vset.pattern.permute.xlu0 0
      %359 = vperm.xlu0 %358, %v353
      %v360 = vpop.permute.xlu0 %359
      %v362 = vsub.f32 %v346, %v360
      %v363 = vmul.f32 %v362, 1.442695
      %v364 = vpow.pop %v363
      %v365 = vld [vmem:[#allocation3] sm:$0xff]
      %v366 = vmul.f32 %v356, %v365
      %v367 = vsel %vm272, %v364, 0.0
      %368 = vadd.xlane.f32.xlu0 %v367
      %v369 = vpop.xlane.xlu0 %368
      %v370 = vadd.f32 %v366, %v369
      %vm371 = vcmask 7168
      %372 = vst.msk [vmem:[#allocation3] sm:$0xff] %vm371, %v370
      %v373 = vld [vmem:[#allocation4] sm:$0xff]
      %375 = vset.pattern.permute.xlu0 0
      %376 = vperm.xlu0 %375, %v356
      %v377 = vpop.permute.xlu0 %376
      %v379 = vmul.f32 %v377, %v373
      %v381 = vsel %vm272, %v364, 0
      %383 = vmatprep.subr.mxu0 0.0
      %384 = vmatpush1.msra.mxu0 %v271
      %385 = vmatprep.subr.mxu0 0.0
      %386 = vmatpush1.msra.mxu0 0.0
      %387 = vmatprep.subr.mxu0 0.0
      %388 = vmatpush1.msra.mxu0 0.0
      %389 = vmatprep.subr.mxu0 0.0
      %390 = vmatpush1.msra.mxu0 0.0
      %391 = vmatprep.subr.mxu0 0.0
      %392 = vmatpush1.msra.mxu0 0.0
      %393 = vmatprep.subr.mxu0 0.0
      %394 = vmatpush1.msra.mxu0 0.0
      %395 = vmatprep.subr.mxu0 0.0
      %396 = vmatpush1.msra.mxu0 0.0
      %397 = vmatprep.subr.mxu0 0.0
      %398 = vmatpush1.msra.mxu0 0.0
      %399 = vmatprep.subr.mxu0 0.0
      %400 = vmatpush1.msra.mxu0 0.0
      %401 = vmatprep.subr.mxu0 0.0
      %402 = vmatpush1.msra.mxu0 0.0
      %403 = vmatprep.subr.mxu0 0.0
      %404 = vmatpush1.msra.mxu0 0.0
      %405 = vmatprep.subr.mxu0 0.0
      %406 = vmatpush1.msra.mxu0 0.0
      %407 = vmatprep.subr.mxu0 0.0
      %408 = vmatpush1.msra.mxu0 0.0
      %409 = vmatprep.subr.mxu0 0.0
      %410 = vmatpush1.msra.mxu0 0.0
      %411 = vmatprep.subr.mxu0 0.0
      %412 = vmatpush1.msra.mxu0 0.0
      %413 = vmatprep.subr.mxu0 0.0
      %414 = vmatpush1.msra.mxu0 0.0
      %415 = vmatprep.subr.mxu0 0.0
      %416 = vmatpush1.msra.mxu0 0.0
      %417 = vmatprep.subr.mxu0 0.0
      %418 = vmatpush1.msra.mxu0 0.0
      %419 = vmatprep.subr.mxu0 0.0
      %420 = vmatpush1.msra.mxu0 0.0
      %421 = vmatprep.subr.mxu0 0.0
      %422 = vmatpush1.msra.mxu0 0.0
      %423 = vmatprep.subr.mxu0 0.0
      %424 = vmatpush1.msra.mxu0 0.0
      %425 = vmatprep.subr.mxu0 0.0
      %426 = vmatpush1.msra.mxu0 0.0
      %427 = vmatprep.subr.mxu0 0.0
      %428 = vmatpush1.msra.mxu0 0.0
      %429 = vmatprep.subr.mxu0 0.0
      %430 = vmatpush1.msra.mxu0 0.0
      %431 = vmatprep.subr.mxu0 0.0
      %432 = vmatpush1.msra.mxu0 0.0
      %433 = vmatprep.subr.mxu0 0.0
      %434 = vmatpush1.msra.mxu0 0.0
      %435 = vmatprep.subr.mxu0 0.0
      %436 = vmatpush1.msra.mxu0 0.0
      %437 = vmatprep.subr.mxu0 0.0
      %438 = vmatpush1.msra.mxu0 0.0
      %439 = vmatprep.subr.mxu0 0.0
      %440 = vmatpush1.msra.mxu0 0.0
      %441 = vmatprep.subr.mxu0 0.0
      %442 = vmatpush1.msra.mxu0 0.0
      %443 = vmatprep.subr.mxu0 0.0
      %444 = vmatpush1.msra.mxu0 0.0
      %445 = vmatprep.subr.mxu0 0.0
      %446 = vmatpush1.msra.mxu0 0.0
      %447 = vmatprep.mubr.f32.mxu0 0.0
      %448 = vmatmul.mubr.f32.gmra.mrb[0].mxu0 %v381
      %v449 = vpop.f32.mrb[0].mxu0
      %v450 = vadd.f32 0.0, %v449
      %v451 = vpop.f32.mrb[0].mxu0
      %452 = vdwg.mxu0
      %v453 = vadd.f32 %v379, %v450
      %454 = vst.msk [vmem:[#allocation4] sm:$0xff] %vm272, %v453
      %455 = vst.msk [vmem:[#allocation2] sm:$0xff] %vm371, %v353
      // Predicated region
      $region37: #{encoder_layer_forward.7} parent=31 // pred_check
        %p456 = pneg %p260
      $region38: #{encoder_layer_forward.7} parent=31 // pred_check_branch
        %458 = sbr.rel (%p456) target = $region40
      $region39: #{encoder_layer_forward.7} parent=31 // pred_region
        %v459 = vld [vmem:[#allocation4] sm:$0xff]
        %v460 = vld [vmem:[#allocation3] sm:$0xff]
        %v461 = vrcp.pop %v460
        %463 = vset.pattern.permute.xlu0 0
        %464 = vperm.xlu0 %463, %v461
        %v465 = vpop.permute.xlu0 %464
        %v467 = vmul.f32 %v459, %v465
        %468 = vst.msk [vmem:[%s259] sm:$0xff] %vm272, %v467
      $region40: #{encoder_layer_forward.7} parent=31 // pred_fallthru
        _
      %p469 = scmp.lt.s32.totalorder %s19, 7
      %s470 = scalar_select %p469, %s19, 7
      %p471 = scmp.lt.s32.totalorder %s20, 0
      %s472 = scalar_select %p471, %s20, 0
      %s473 = sadd.s32 %s472, %s470
      %s474 = smul.addr %s473, 8
      %s475 = scalar_lea.vmem %s3, %s474
      // Predicated region
      $region41: #{encoder_layer_forward.7} parent=31 // pred_check
        %p476 = pneg %p137
      $region42: #{encoder_layer_forward.7} parent=31 // pred_check_branch
        %478 = sbr.rel (%p476) target = $region44
      $region43: #{encoder_layer_forward.7} parent=31 // pred_region
        _
      $region44: #{encoder_layer_forward.7} parent=31 // pred_fallthru
        _
    $region32: #{encoder_layer_forward.7} parent=5 // pred_fallthru
      _
    %p479 = scmp.le.s32.totalorder 2, %s9
    // Predicated region
    $region45: #{encoder_layer_forward.7} parent=5 // pred_check
      %p480 = pneg %p479
    $region46: #{encoder_layer_forward.7} parent=5 // pred_check_branch
      %482 = sbr.rel (%p480) target = $region48
    $region47: #{encoder_layer_forward.7} parent=5 // pred_region
      %s483 = ssub.s32 %s9, 2
      // Predicated region
      $region49: #{encoder_layer_forward.7} parent=47 // pred_check
        %p484 = pneg %p143
      $region50: #{encoder_layer_forward.7} parent=47 // pred_check_branch
        %486 = sbr.rel (%p484) target = $region52
      $region51: #{encoder_layer_forward.7} parent=47 // pred_region
        %p487 = scmp.lt.s32.totalorder %s22, 7
        %s488 = scalar_select %p487, %s22, 7
        %p489 = scmp.lt.s32.totalorder %s23, 0
        %s490 = scalar_select %p489, %s23, 0
        %s491 = sadd.s32 %s490, %s488
        %s492 = smul.addr %s491, 8
        %s493 = scalar_lea.vmem %s3, %s492
      $region52: #{encoder_layer_forward.7} parent=47 // pred_fallthru
        _
    $region48: #{encoder_layer_forward.7} parent=5 // pred_fallthru
      _
  $region6: #{encoder_layer_forward.7} parent=0 // loop_footer
    %s13 = sadd.s32 1, %s9
  $region7: #{encoder_layer_forward.7} parent=0 // loop_footer_branch
    %8 = sbr.rel target = $region3
  $region8: #{encoder_layer_forward.7} parent=0 // loop_exit
    _

// kernel: encoder_layer_forward.8
$region0: #{encoder_layer_forward.8}
  #allocation0 [shape = 'u32[]', space=smem, size = 0x4, offset = 0x4, fixed_abs, tag = 'smem constant byte address 0x4 - core index']
  #allocation1 [shape = 'u32[144,128]{1,0:T(1,128)}', space=vmem, size = 0x12000, scoped, tag = 'internal scratch']
  #allocation2 [shape = 'f32[16,32]{1,0:T(8,128)}', space=vmem, size = 0x2000, scoped, tag = 'scratch operand']
  %s0 = inlined_call_operand.vmem [shape: f32[16,32], index: 0, kind: input, shape index: {}]
  %s1 = inlined_call_operand.vmem [shape: f32[32,32], index: 1, kind: input, shape index: {}]
  %s2 = inlined_call_operand.vmem [shape: f32[1,32], index: 2, kind: input, shape index: {}]
  %s3 = inlined_call_operand.vmem [shape: f32[16,32], index: 3, kind: input, shape index: {}]
  %s4 = inlined_call_operand.vmem [shape: f32[16,32], index: 4, kind: input, shape index: {}]
  %s5 = inlined_call_operand.vmem [shape: f32[1,32], index: 5, kind: input, shape index: {}]
  %s6 = inlined_call_operand.vmem [shape: f32[1,32], index: 6, kind: input, shape index: {}]
  %s7 = inlined_call_operand.vmem [shape: f32[16,32], index: 7, kind: output, shape index: {}]
  %s8 = sld [smem:[#allocation0]]
  $region46: #{encoder_layer_forward.8} parent=0
    _
  %s10 = ssub.s32 1, %s8
  %s11 = scalar_select 0, %s10, %s8
  // Predicated region
  $region2: #{encoder_layer_forward.8} parent=0 // pred_check
    _
  $region3: #{encoder_layer_forward.8} parent=0 // pred_check_branch
    %13 = sbr.rel (0) target = $region5
  $region4: #{encoder_layer_forward.8} parent=0 // pred_region
    _
  $region5: #{encoder_layer_forward.8} parent=0 // pred_fallthru
    _
  // Predicated region
  $region6: #{encoder_layer_forward.8} parent=0 // pred_check
    _
  $region7: #{encoder_layer_forward.8} parent=0 // pred_check_branch
    %15 = sbr.rel (0) target = $region9
  $region8: #{encoder_layer_forward.8} parent=0 // pred_region
    _
  $region9: #{encoder_layer_forward.8} parent=0 // pred_fallthru
    _
  // Predicated region
  $region10: #{encoder_layer_forward.8} parent=0 // pred_check
    _
  $region11: #{encoder_layer_forward.8} parent=0 // pred_check_branch
    %17 = sbr.rel (0) target = $region13
  $region12: #{encoder_layer_forward.8} parent=0 // pred_region
    _
  $region13: #{encoder_layer_forward.8} parent=0 // pred_fallthru
    _
  // Predicated region
  $region14: #{encoder_layer_forward.8} parent=0 // pred_check
    _
  $region15: #{encoder_layer_forward.8} parent=0 // pred_check_branch
    %19 = sbr.rel (0) target = $region17
  $region16: #{encoder_layer_forward.8} parent=0 // pred_region
    _
  $region17: #{encoder_layer_forward.8} parent=0 // pred_fallthru
    _
  // Predicated region
  $region18: #{encoder_layer_forward.8} parent=0 // pred_check
    _
  $region19: #{encoder_layer_forward.8} parent=0 // pred_check_branch
    %21 = sbr.rel (0) target = $region21
  $region20: #{encoder_layer_forward.8} parent=0 // pred_region
    _
  $region21: #{encoder_layer_forward.8} parent=0 // pred_fallthru
    _
  // Predicated region
  $region22: #{encoder_layer_forward.8} parent=0 // pred_check
    _
  $region23: #{encoder_layer_forward.8} parent=0 // pred_check_branch
    %23 = sbr.rel (0) target = $region25
  $region24: #{encoder_layer_forward.8} parent=0 // pred_region
    _
  $region25: #{encoder_layer_forward.8} parent=0 // pred_fallthru
    _
  // Predicated region
  $region26: #{encoder_layer_forward.8} parent=0 // pred_check
    _
  $region27: #{encoder_layer_forward.8} parent=0 // pred_check_branch
    %25 = sbr.rel (0) target = $region29
  $region28: #{encoder_layer_forward.8} parent=0 // pred_region
    _
  $region29: #{encoder_layer_forward.8} parent=0 // pred_fallthru
    _
  %p26 = scmp.eq.s32.totalorder 0, 0
  // Predicated region
  $region30: #{encoder_layer_forward.8} parent=0 // pred_check
    %p27 = pneg %p26
  $region31: #{encoder_layer_forward.8} parent=0 // pred_check_branch
    %29 = sbr.rel (%p27) target = $region33
  $region32: #{encoder_layer_forward.8} parent=0 // pred_region
    %vm30 = vcmask 261120
    %31 = vst.msk [vmem:[#allocation2] sm:$0xff] %vm30, 0.0
    %32 = vst.msk [vmem:[#allocation2 + $0x8] sm:$0xff] %vm30, 0.0
  $region33: #{encoder_layer_forward.8} parent=0 // pred_fallthru
    _
  %v33 = vld [vmem:[#allocation2] sm:$0xff]
  %v34 = vld [vmem:[#allocation2 + $0x8] sm:$0xff]
  %v35 = vld [vmem:[%s0] sm:$0xff]
  %v36 = vld [vmem:[%s0 + $0x8] sm:$0xff]
  %v37 = vld [vmem:[%s1] sm:$0xff]
  %v38 = vld [vmem:[%s1 + $0x8] sm:$0xff]
  %v39 = vld [vmem:[%s1 + $0x10] sm:$0xff]
  %v40 = vld [vmem:[%s1 + $0x18] sm:$0xff]
  %vm41 = vcmask 261120
  %v43 = vsel %vm41, %v35, 0
  %v46 = vsel %vm41, %v36, 0
  %48 = vmatprep.subr.mxu0 0.0
  %49 = vmatpush1.msra.mxu0 %v37
  %50 = vmatprep.subr.mxu0 0.0
  %51 = vmatpush1.msra.mxu0 %v38
  %52 = vmatprep.subr.mxu0 0.0
  %53 = vmatpush1.msra.mxu0 %v39
  %54 = vmatprep.subr.mxu0 0.0
  %55 = vmatpush1.msra.mxu0 %v40
  %56 = vmatprep.subr.mxu0 0.0
  %57 = vmatpush1.msra.mxu0 0.0
  %58 = vmatprep.subr.mxu0 0.0
  %59 = vmatpush1.msra.mxu0 0.0
  %60 = vmatprep.subr.mxu0 0.0
  %61 = vmatpush1.msra.mxu0 0.0
  %62 = vmatprep.subr.mxu0 0.0
  %63 = vmatpush1.msra.mxu0 0.0
  %64 = vmatprep.subr.mxu0 0.0
  %65 = vmatpush1.msra.mxu0 0.0
  %66 = vmatprep.subr.mxu0 0.0
  %67 = vmatpush1.msra.mxu0 0.0
  %68 = vmatprep.subr.mxu0 0.0
  %69 = vmatpush1.msra.mxu0 0.0
  %70 = vmatprep.subr.mxu0 0.0
  %71 = vmatpush1.msra.mxu0 0.0
  %72 = vmatprep.subr.mxu0 0.0
  %73 = vmatpush1.msra.mxu0 0.0
  %74 = vmatprep.subr.mxu0 0.0
  %75 = vmatpush1.msra.mxu0 0.0
  %76 = vmatprep.subr.mxu0 0.0
  %77 = vmatpush1.msra.mxu0 0.0
  %78 = vmatprep.subr.mxu0 0.0
  %79 = vmatpush1.msra.mxu0 0.0
  %80 = vmatprep.subr.mxu0 0.0
  %81 = vmatpush1.msra.mxu0 0.0
  %82 = vmatprep.subr.mxu0 0.0
  %83 = vmatpush1.msra.mxu0 0.0
  %84 = vmatprep.subr.mxu0 0.0
  %85 = vmatpush1.msra.mxu0 0.0
  %86 = vmatprep.subr.mxu0 0.0
  %87 = vmatpush1.msra.mxu0 0.0
  %88 = vmatprep.subr.mxu0 0.0
  %89 = vmatpush1.msra.mxu0 0.0
  %90 = vmatprep.subr.mxu0 0.0
  %91 = vmatpush1.msra.mxu0 0.0
  %92 = vmatprep.subr.mxu0 0.0
  %93 = vmatpush1.msra.mxu0 0.0
  %94 = vmatprep.subr.mxu0 0.0
  %95 = vmatpush1.msra.mxu0 0.0
  %96 = vmatprep.subr.mxu0 0.0
  %97 = vmatpush1.msra.mxu0 0.0
  %98 = vmatprep.subr.mxu0 0.0
  %99 = vmatpush1.msra.mxu0 0.0
  %100 = vmatprep.subr.mxu0 0.0
  %101 = vmatpush1.msra.mxu0 0.0
  %102 = vmatprep.subr.mxu0 0.0
  %103 = vmatpush1.msra.mxu0 0.0
  %104 = vmatprep.subr.mxu0 0.0
  %105 = vmatpush1.msra.mxu0 0.0
  %106 = vmatprep.subr.mxu0 0.0
  %107 = vmatpush1.msra.mxu0 0.0
  %108 = vmatprep.subr.mxu0 0.0
  %109 = vmatpush1.msra.mxu0 0.0
  %110 = vmatprep.subr.mxu0 0.0
  %111 = vmatpush1.msra.mxu0 0.0
  %112 = vmatprep.mubr.f32.mxu0 0.0
  %113 = vmatmul.mubr.f32.gmra.mrb[0].mxu0 %v43
  %v114 = vpop.f32.mrb[0].mxu0
  %v115 = vadd.f32 0.0, %v114
  %v116 = vpop.f32.mrb[0].mxu0
  %117 = vmatprep.mubr.f32.mxu0 0.0
  %118 = vmatmul.mubr.f32.gmra.mrb[0].mxu0 %v46
  %v119 = vpop.f32.mrb[0].mxu0
  %v120 = vadd.f32 0.0, %v119
  %v121 = vpop.f32.mrb[0].mxu0
  %122 = vdwg.mxu0
  %v123 = vadd.f32 %v33, %v115
  %v124 = vadd.f32 %v34, %v120
  %125 = vst.msk [vmem:[#allocation2] sm:$0xff] %vm41, %v123
  %126 = vst.msk [vmem:[#allocation2 + $0x8] sm:$0xff] %vm41, %v124
  // Predicated region
  $region34: #{encoder_layer_forward.8} parent=0 // pred_check
    %p127 = pneg %p26
  $region35: #{encoder_layer_forward.8} parent=0 // pred_check_branch
    %129 = sbr.rel (%p127) target = $region37
  $region36: #{encoder_layer_forward.8} parent=0 // pred_region
    %v130 = vld [vmem:[%s3] sm:$0xff]
    %v131 = vld [vmem:[%s3 + $0x8] sm:$0xff]
    %v132 = vld [vmem:[#allocation2] sm:$0xff]
    %v133 = vld [vmem:[#allocation2 + $0x8] sm:$0xff]
    %v134 = vld [vmem:[%s2] sm:$0x1]
    %v136 = vlaneseq
    %v137 = vshrl.u32 %v136, 7
    %v138 = vsub.s32 0, %v137
    %v139 = vrot.slane %v134, %v138
    %v141 = vadd.f32 %v132, %v139
    %v142 = vadd.f32 %v133, %v139
    %v143 = vadd.f32 %v130, %v141
    %v144 = vadd.f32 %v131, %v142
    %v145 = vld [vmem:[%s4] sm:$0xff]
    %v146 = vld [vmem:[%s4 + $0x8] sm:$0xff]
    %v147 = vmul.f32 %v130, %v145
    %v148 = vmul.f32 %v131, %v146
    %v149 = vadd.f32 %v143, %v147
    %v150 = vadd.f32 %v144, %v148
    %v151 = vsel %vm41, %v149, 0.0
    %152 = vadd.xlane.f32.xlu0 %v151
    %v153 = vpop.xlane.xlu0 %152
    %v154 = vsel %vm41, %v150, 0.0
    %155 = vadd.xlane.f32.xlu0 %v154
    %v156 = vpop.xlane.xlu0 %155
    %v157 = vrcp.pop 32.0
    %v158 = vmul.f32 %v153, %v157
    %v159 = vmul.f32 %v156, %v157
    %v160 = vsub.f32 %v149, %v158
    %v161 = vsub.f32 %v150, %v159
    %v162 = vmul.f32 %v160, %v160
    %v163 = vmul.f32 %v161, %v161
    %v164 = vsel %vm41, %v162, 0.0
    %165 = vadd.xlane.f32.xlu0 %v164
    %v166 = vpop.xlane.xlu0 %165
    %v167 = vsel %vm41, %v163, 0.0
    %168 = vadd.xlane.f32.xlu0 %v167
    %v169 = vpop.xlane.xlu0 %168
    %v170 = vmul.f32 %v166, %v157
    %v171 = vmul.f32 %v169, %v157
    %v172 = vadd.f32 %v170, 1e-05
    %v173 = vadd.f32 %v171, 1e-05
    %v174 = vrsqrt.pop %v172
    %v175 = vrsqrt.pop %v173
    %v176 = vmul.f32 %v160, %v174
    %v177 = vmul.f32 %v161, %v175
    %v178 = vld [vmem:[%s5] sm:$0x1]
    %v180 = vlaneseq
    %v181 = vshrl.u32 %v180, 7
    %v182 = vsub.s32 0, %v181
    %v183 = vrot.slane %v178, %v182
    %v185 = vmul.f32 %v176, %v183
    %v186 = vmul.f32 %v177, %v183
    %v187 = vld [vmem:[%s6] sm:$0x1]
    %v189 = vlaneseq
    %v190 = vshrl.u32 %v189, 7
    %v191 = vsub.s32 0, %v190
    %v192 = vrot.slane %v187, %v191
    %v194 = vadd.f32 %v185, %v192
    %v195 = vadd.f32 %v186, %v192
    %196 = vst.msk [vmem:[%s7] sm:$0xff] %vm41, %v194
    %197 = vst.msk [vmem:[%s7 + $0x8] sm:$0xff] %vm41, %v195
  $region37: #{encoder_layer_forward.8} parent=0 // pred_fallthru
    _
  // Predicated region
  $region38: #{encoder_layer_forward.8} parent=0 // pred_check
    _
  $region39: #{encoder_layer_forward.8} parent=0 // pred_check_branch
    %199 = sbr.rel (0) target = $region41
  $region40: #{encoder_layer_forward.8} parent=0 // pred_region
    _
  $region41: #{encoder_layer_forward.8} parent=0 // pred_fallthru
    _
  // Predicated region
  $region42: #{encoder_layer_forward.8} parent=0 // pred_check
    _
  $region43: #{encoder_layer_forward.8} parent=0 // pred_check_branch
    %201 = sbr.rel (0) target = $region45
  $region44: #{encoder_layer_forward.8} parent=0 // pred_region
    _
  $region45: #{encoder_layer_forward.8} parent=0 // pred_fallthru
    _

// kernel: encoder_layer_forward.9
$region0: #{encoder_layer_forward.9}
  #allocation0 [shape = 'u32[]', space=smem, size = 0x4, offset = 0x4, fixed_abs, tag = 'smem constant byte address 0x4 - core index']
  #allocation1 [shape = 'u32[144,128]{1,0:T(1,128)}', space=vmem, size = 0x12000, scoped, tag = 'internal scratch']
  #allocation2 [shape = 'f32[16,32]{1,0:T(8,128)}', space=vmem, size = 0x2000, scoped, tag = 'scratch operand']
  %s0 = inlined_call_operand.vmem [shape: f32[16,32], index: 0, kind: input, shape index: {}]
  %s1 = inlined_call_operand.vmem [shape: f32[32,64], index: 1, kind: input, shape index: {}]
  %s2 = inlined_call_operand.vmem [shape: f32[1,64], index: 2, kind: input, shape index: {}]
  %s3 = inlined_call_operand.vmem [shape: f32[64,32], index: 3, kind: input, shape index: {}]
  %s4 = inlined_call_operand.vmem [shape: f32[1,32], index: 4, kind: input, shape index: {}]
  %s5 = inlined_call_operand.vmem [shape: f32[1,32], index: 5, kind: input, shape index: {}]
  %s6 = inlined_call_operand.vmem [shape: f32[1,32], index: 6, kind: input, shape index: {}]
  %s7 = inlined_call_operand.hbm [shape: f32[16,32], index: 7, kind: output, shape index: {}]
  %s8 = sld [smem:[#allocation0]]
  $region46: #{encoder_layer_forward.9} parent=0
    _
  %s10 = ssub.s32 1, %s8
  %s11 = scalar_select 0, %s10, %s8
  $region1: #{encoder_layer_forward.9} parent=0
    #allocation3 [shape = 'u8[8192]{0}', space=vmem, size = 0x2000, scoped, tag = 'output window, operand 0, single buffered']
    #allocation4 [shape = 's32[1]{0}', space=sflag, size = 0x4, scoped, tag = 'scoped memory for encoder_layer_forward.9']
    %12 = vsyncpa [#allocation4], 0
    // Predicated region
    $region2: #{encoder_layer_forward.9} parent=1 // pred_check
      _
    $region3: #{encoder_layer_forward.9} parent=1 // pred_check_branch
      %14 = sbr.rel (0) target = $region5
    $region4: #{encoder_layer_forward.9} parent=1 // pred_region
      _
    $region5: #{encoder_layer_forward.9} parent=1 // pred_fallthru
      _
    // Predicated region
    $region6: #{encoder_layer_forward.9} parent=1 // pred_check
      _
    $region7: #{encoder_layer_forward.9} parent=1 // pred_check_branch
      %16 = sbr.rel (0) target = $region9
    $region8: #{encoder_layer_forward.9} parent=1 // pred_region
      _
    $region9: #{encoder_layer_forward.9} parent=1 // pred_fallthru
      _
    // Predicated region
    $region10: #{encoder_layer_forward.9} parent=1 // pred_check
      _
    $region11: #{encoder_layer_forward.9} parent=1 // pred_check_branch
      %18 = sbr.rel (0) target = $region13
    $region12: #{encoder_layer_forward.9} parent=1 // pred_region
      _
    $region13: #{encoder_layer_forward.9} parent=1 // pred_fallthru
      _
    // Predicated region
    $region14: #{encoder_layer_forward.9} parent=1 // pred_check
      _
    $region15: #{encoder_layer_forward.9} parent=1 // pred_check_branch
      %20 = sbr.rel (0) target = $region17
    $region16: #{encoder_layer_forward.9} parent=1 // pred_region
      _
    $region17: #{encoder_layer_forward.9} parent=1 // pred_fallthru
      _
    // Predicated region
    $region18: #{encoder_layer_forward.9} parent=1 // pred_check
      _
    $region19: #{encoder_layer_forward.9} parent=1 // pred_check_branch
      %22 = sbr.rel (0) target = $region21
    $region20: #{encoder_layer_forward.9} parent=1 // pred_region
      _
    $region21: #{encoder_layer_forward.9} parent=1 // pred_fallthru
      _
    // Predicated region
    $region22: #{encoder_layer_forward.9} parent=1 // pred_check
      _
    $region23: #{encoder_layer_forward.9} parent=1 // pred_check_branch
      %24 = sbr.rel (0) target = $region25
    $region24: #{encoder_layer_forward.9} parent=1 // pred_region
      _
    $region25: #{encoder_layer_forward.9} parent=1 // pred_fallthru
      _
    // Predicated region
    $region26: #{encoder_layer_forward.9} parent=1 // pred_check
      _
    $region27: #{encoder_layer_forward.9} parent=1 // pred_check_branch
      %26 = sbr.rel (0) target = $region29
    $region28: #{encoder_layer_forward.9} parent=1 // pred_region
      _
    $region29: #{encoder_layer_forward.9} parent=1 // pred_fallthru
      _
    %p27 = scmp.eq.s32.totalorder 0, 0
    // Predicated region
    $region30: #{encoder_layer_forward.9} parent=1 // pred_check
      %p28 = pneg %p27
    $region31: #{encoder_layer_forward.9} parent=1 // pred_check_branch
      %30 = sbr.rel (%p28) target = $region33
    $region32: #{encoder_layer_forward.9} parent=1 // pred_region
      %vm31 = vcmask 261120
      %32 = vst.msk [vmem:[#allocation2] sm:$0xff] %vm31, 0.0
      %33 = vst.msk [vmem:[#allocation2 + $0x8] sm:$0xff] %vm31, 0.0
    $region33: #{encoder_layer_forward.9} parent=1 // pred_fallthru
      _
    %v34 = vld [vmem:[%s0] sm:$0xff]
    %v35 = vld [vmem:[%s0 + $0x8] sm:$0xff]
    %v36 = vld [vmem:[%s1] sm:$0xff]
    %v37 = vld [vmem:[%s1 + $0x8] sm:$0xff]
    %v38 = vld [vmem:[%s1 + $0x10] sm:$0xff]
    %v39 = vld [vmem:[%s1 + $0x18] sm:$0xff]
    %v40 = vld [vmem:[%s2] sm:$0x1]
    %v42 = vlaneseq
    %v43 = vshrl.u32 %v42, 7
    %v44 = vsub.s32 0, %v43
    %v45 = vrot.slane %v40, %v44
    %vm47 = vcmask 261120
    %v49 = vsel %vm47, %v34, 0
    %v52 = vsel %vm47, %v35, 0
    %54 = vmatprep.subr.mxu0 0.0
    %55 = vmatpush1.msra.mxu0 %v36
    %56 = vmatprep.subr.mxu0 0.0
    %57 = vmatpush1.msra.mxu0 %v37
    %58 = vmatprep.subr.mxu0 0.0
    %59 = vmatpush1.msra.mxu0 %v38
    %60 = vmatprep.subr.mxu0 0.0
    %61 = vmatpush1.msra.mxu0 %v39
    %62 = vmatprep.subr.mxu0 0.0
    %63 = vmatpush1.msra.mxu0 0.0
    %64 = vmatprep.subr.mxu0 0.0
    %65 = vmatpush1.msra.mxu0 0.0
    %66 = vmatprep.subr.mxu0 0.0
    %67 = vmatpush1.msra.mxu0 0.0
    %68 = vmatprep.subr.mxu0 0.0
    %69 = vmatpush1.msra.mxu0 0.0
    %70 = vmatprep.subr.mxu0 0.0
    %71 = vmatpush1.msra.mxu0 0.0
    %72 = vmatprep.subr.mxu0 0.0
    %73 = vmatpush1.msra.mxu0 0.0
    %74 = vmatprep.subr.mxu0 0.0
    %75 = vmatpush1.msra.mxu0 0.0
    %76 = vmatprep.subr.mxu0 0.0
    %77 = vmatpush1.msra.mxu0 0.0
    %78 = vmatprep.subr.mxu0 0.0
    %79 = vmatpush1.msra.mxu0 0.0
    %80 = vmatprep.subr.mxu0 0.0
    %81 = vmatpush1.msra.mxu0 0.0
    %82 = vmatprep.subr.mxu0 0.0
    %83 = vmatpush1.msra.mxu0 0.0
    %84 = vmatprep.subr.mxu0 0.0
    %85 = vmatpush1.msra.mxu0 0.0
    %86 = vmatprep.subr.mxu0 0.0
    %87 = vmatpush1.msra.mxu0 0.0
    %88 = vmatprep.subr.mxu0 0.0
    %89 = vmatpush1.msra.mxu0 0.0
    %90 = vmatprep.subr.mxu0 0.0
    %91 = vmatpush1.msra.mxu0 0.0
    %92 = vmatprep.subr.mxu0 0.0
    %93 = vmatpush1.msra.mxu0 0.0
    %94 = vmatprep.subr.mxu0 0.0
    %95 = vmatpush1.msra.mxu0 0.0
    %96 = vmatprep.subr.mxu0 0.0
    %97 = vmatpush1.msra.mxu0 0.0
    %98 = vmatprep.subr.mxu0 0.0
    %99 = vmatpush1.msra.mxu0 0.0
    %100 = vmatprep.subr.mxu0 0.0
    %101 = vmatpush1.msra.mxu0 0.0
    %102 = vmatprep.subr.mxu0 0.0
    %103 = vmatpush1.msra.mxu0 0.0
    %104 = vmatprep.subr.mxu0 0.0
    %105 = vmatpush1.msra.mxu0 0.0
    %106 = vmatprep.subr.mxu0 0.0
    %107 = vmatpush1.msra.mxu0 0.0
    %108 = vmatprep.subr.mxu0 0.0
    %109 = vmatpush1.msra.mxu0 0.0
    %110 = vmatprep.subr.mxu0 0.0
    %111 = vmatpush1.msra.mxu0 0.0
    %112 = vmatprep.subr.mxu0 0.0
    %113 = vmatpush1.msra.mxu0 0.0
    %114 = vmatprep.subr.mxu0 0.0
    %115 = vmatpush1.msra.mxu0 0.0
    %116 = vmatprep.subr.mxu0 0.0
    %117 = vmatpush1.msra.mxu0 0.0
    %118 = vmatprep.mubr.f32.mxu0 0.0
    %119 = vmatmul.mubr.f32.gmra.mrb[0].mxu0 %v49
    %v120 = vpop.f32.mrb[0].mxu0
    %v121 = vadd.f32 %v45, %v120
    %v122 = vpop.f32.mrb[0].mxu0
    %123 = vmatprep.mubr.f32.mxu0 0.0
    %124 = vmatmul.mubr.f32.gmra.mrb[0].mxu0 %v52
    %v125 = vpop.f32.mrb[0].mxu0
    %v126 = vadd.f32 %v45, %v125
    %v127 = vpop.f32.mrb[0].mxu0
    %128 = vdwg.mxu0
    %v129 = vmax.f32 %v121, 0.0
    %v130 = vmax.f32 %v126, 0.0
    %v131 = vld [vmem:[#allocation2] sm:$0xff]
    %v132 = vld [vmem:[#allocation2 + $0x8] sm:$0xff]
    %v133 = vld [vmem:[%s3] sm:$0xff]
    %v134 = vld [vmem:[%s3 + $0x8] sm:$0xff]
    %v135 = vld [vmem:[%s3 + $0x10] sm:$0xff]
    %v136 = vld [vmem:[%s3 + $0x18] sm:$0xff]
    %v137 = vld [vmem:[%s3 + $0x20] sm:$0xff]
    %v138 = vld [vmem:[%s3 + $0x28] sm:$0xff]
    %v139 = vld [vmem:[%s3 + $0x30] sm:$0xff]
    %v140 = vld [vmem:[%s3 + $0x38] sm:$0xff]
    %vm141 = vcmask 523264
    %v143 = vsel %vm141, %v129, 0
    %v146 = vsel %vm141, %v130, 0
    %148 = vmatprep.subr.mxu0 0.0
    %149 = vmatpush1.msra.mxu0 %v133
    %150 = vmatprep.subr.mxu0 0.0
    %151 = vmatpush1.msra.mxu0 %v134
    %152 = vmatprep.subr.mxu0 0.0
    %153 = vmatpush1.msra.mxu0 %v135
    %154 = vmatprep.subr.mxu0 0.0
    %155 = vmatpush1.msra.mxu0 %v136
    %156 = vmatprep.subr.mxu0 0.0
    %157 = vmatpush1.msra.mxu0 %v137
    %158 = vmatprep.subr.mxu0 0.0
    %159 = vmatpush1.msra.mxu0 %v138
    %160 = vmatprep.subr.mxu0 0.0
    %161 = vmatpush1.msra.mxu0 %v139
    %162 = vmatprep.subr.mxu0 0.0
    %163 = vmatpush1.msra.mxu0 %v140
    %164 = vmatprep.subr.mxu0 0.0
    %165 = vmatpush1.msra.mxu0 0.0
    %166 = vmatprep.subr.mxu0 0.0
    %167 = vmatpush1.msra.mxu0 0.0
    %168 = vmatprep.subr.mxu0 0.0
    %169 = vmatpush1.msra.mxu0 0.0
    %170 = vmatprep.subr.mxu0 0.0
    %171 = vmatpush1.msra.mxu0 0.0
    %172 = vmatprep.subr.mxu0 0.0
    %173 = vmatpush1.msra.mxu0 0.0
    %174 = vmatprep.subr.mxu0 0.0
    %175 = vmatpush1.msra.mxu0 0.0
    %176 = vmatprep.subr.mxu0 0.0
    %177 = vmatpush1.msra.mxu0 0.0
    %178 = vmatprep.subr.mxu0 0.0
    %179 = vmatpush1.msra.mxu0 0.0
    %180 = vmatprep.subr.mxu0 0.0
    %181 = vmatpush1.msra.mxu0 0.0
    %182 = vmatprep.subr.mxu0 0.0
    %183 = vmatpush1.msra.mxu0 0.0
    %184 = vmatprep.subr.mxu0 0.0
    %185 = vmatpush1.msra.mxu0 0.0
    %186 = vmatprep.subr.mxu0 0.0
    %187 = vmatpush1.msra.mxu0 0.0
    %188 = vmatprep.subr.mxu0 0.0
    %189 = vmatpush1.msra.mxu0 0.0
    %190 = vmatprep.subr.mxu0 0.0
    %191 = vmatpush1.msra.mxu0 0.0
    %192 = vmatprep.subr.mxu0 0.0
    %193 = vmatpush1.msra.mxu0 0.0
    %194 = vmatprep.subr.mxu0 0.0
    %195 = vmatpush1.msra.mxu0 0.0
    %196 = vmatprep.subr.mxu0 0.0
    %197 = vmatpush1.msra.mxu0 0.0
    %198 = vmatprep.subr.mxu0 0.0
    %199 = vmatpush1.msra.mxu0 0.0
    %200 = vmatprep.subr.mxu0 0.0
    %201 = vmatpush1.msra.mxu0 0.0
    %202 = vmatprep.subr.mxu0 0.0
    %203 = vmatpush1.msra.mxu0 0.0
    %204 = vmatprep.subr.mxu0 0.0
    %205 = vmatpush1.msra.mxu0 0.0
    %206 = vmatprep.subr.mxu0 0.0
    %207 = vmatpush1.msra.mxu0 0.0
    %208 = vmatprep.subr.mxu0 0.0
    %209 = vmatpush1.msra.mxu0 0.0
    %210 = vmatprep.subr.mxu0 0.0
    %211 = vmatpush1.msra.mxu0 0.0
    %212 = vmatprep.mubr.f32.mxu0 0.0
    %213 = vmatmul.mubr.f32.gmra.mrb[0].mxu0 %v143
    %v214 = vpop.f32.mrb[0].mxu0
    %v215 = vadd.f32 0.0, %v214
    %v216 = vpop.f32.mrb[0].mxu0
    %217 = vmatprep.mubr.f32.mxu0 0.0
    %218 = vmatmul.mubr.f32.gmra.mrb[0].mxu0 %v146
    %v219 = vpop.f32.mrb[0].mxu0
    %v220 = vadd.f32 0.0, %v219
    %v221 = vpop.f32.mrb[0].mxu0
    %222 = vdwg.mxu0
    %v223 = vadd.f32 %v131, %v215
    %v224 = vadd.f32 %v132, %v220
    %225 = vst.msk [vmem:[#allocation2] sm:$0xff] %vm47, %v223
    %226 = vst.msk [vmem:[#allocation2 + $0x8] sm:$0xff] %vm47, %v224
    // Predicated region
    $region34: #{encoder_layer_forward.9} parent=1 // pred_check
      %p227 = pneg %p27
    $region35: #{encoder_layer_forward.9} parent=1 // pred_check_branch
      %229 = sbr.rel (%p227) target = $region37
    $region36: #{encoder_layer_forward.9} parent=1 // pred_region
      %v230 = vld [vmem:[#allocation2] sm:$0xff]
      %v231 = vld [vmem:[#allocation2 + $0x8] sm:$0xff]
      %v232 = vadd.f32 %v34, %v230
      %v233 = vadd.f32 %v35, %v231
      %v234 = vld [vmem:[%s4] sm:$0x1]
      %v236 = vlaneseq
      %v237 = vshrl.u32 %v236, 7
      %v238 = vsub.s32 0, %v237
      %v239 = vrot.slane %v234, %v238
      %v241 = vadd.f32 %v232, %v239
      %v242 = vadd.f32 %v233, %v239
      %v243 = vsel %vm47, %v241, 0.0
      %244 = vadd.xlane.f32.xlu0 %v243
      %v245 = vpop.xlane.xlu0 %244
      %v246 = vsel %vm47, %v242, 0.0
      %247 = vadd.xlane.f32.xlu0 %v246
      %v248 = vpop.xlane.xlu0 %247
      %v249 = vrcp.pop 32.0
      %v250 = vmul.f32 %v245, %v249
      %v251 = vmul.f32 %v248, %v249
      %v252 = vsub.f32 %v241, %v250
      %v253 = vsub.f32 %v242, %v251
      %v254 = vmul.f32 %v252, %v252
      %v255 = vmul.f32 %v253, %v253
      %v256 = vsel %vm47, %v254, 0.0
      %257 = vadd.xlane.f32.xlu0 %v256
      %v258 = vpop.xlane.xlu0 %257
      %v259 = vsel %vm47, %v255, 0.0
      %260 = vadd.xlane.f32.xlu0 %v259
      %v261 = vpop.xlane.xlu0 %260
      %v262 = vmul.f32 %v258, %v249
      %v263 = vmul.f32 %v261, %v249
      %v264 = vadd.f32 %v262, 1e-05
      %v265 = vadd.f32 %v263, 1e-05
      %v266 = vrsqrt.pop %v264
      %v267 = vrsqrt.pop %v265
      %v268 = vmul.f32 %v252, %v266
      %v269 = vmul.f32 %v253, %v267
      %v270 = vld [vmem:[%s5] sm:$0x1]
      %v272 = vlaneseq
      %v273 = vshrl.u32 %v272, 7
      %v274 = vsub.s32 0, %v273
      %v275 = vrot.slane %v270, %v274
      %v277 = vmul.f32 %v268, %v275
      %v278 = vmul.f32 %v269, %v275
      %v279 = vld [vmem:[%s6] sm:$0x1]
      %v281 = vlaneseq
      %v282 = vshrl.u32 %v281, 7
      %v283 = vsub.s32 0, %v282
      %v284 = vrot.slane %v279, %v283
      %v286 = vadd.f32 %v277, %v284
      %v287 = vadd.f32 %v278, %v284
      %288 = vst.msk [vmem:[#allocation3] sm:$0xff] %vm47, %v286
      %289 = vst.msk [vmem:[#allocation3 + $0x8] sm:$0xff] %vm47, %v287
    $region37: #{encoder_layer_forward.9} parent=1 // pred_fallthru
      _
    // Predicated region
    $region38: #{encoder_layer_forward.9} parent=1 // pred_check
      _
    $region39: #{encoder_layer_forward.9} parent=1 // pred_check_branch
      %291 = sbr.rel (0) target = $region41
    $region40: #{encoder_layer_forward.9} parent=1 // pred_region
      %s293 = ssub.s32 256, 256
      %294 = vsyncadd [#allocation4], %s293
      %s295 = sshll.u32 [#allocation3], 4
      %s296 = int_to_ptr.vmem [resolvable:$true] %s295
      %301 = dma.vmem_to_hbm [thread:$0]  %s296, 256, %s7, [#allocation4], 128, 128, 8
    $region41: #{encoder_layer_forward.9} parent=1 // pred_fallthru
      _
    // Predicated region
    $region42: #{encoder_layer_forward.9} parent=1 // pred_check
      _
    $region43: #{encoder_layer_forward.9} parent=1 // pred_check_branch
      %303 = sbr.rel (0) target = $region45
    $region44: #{encoder_layer_forward.9} parent=1 // pred_region
      %304 = dma.done [#allocation4], 256
    $region45: #{encoder_layer_forward.9} parent=1 // pred_fallthru
      _
    %305 = vsyncpa [#allocation4], 1

</llo_original>
